<compile_context>
chip_gen: v6e
topology: v6e:2x2x1
jax: 0.10.0
libtpu: 0.0.40
codegen_flags: <defaults>
</compile_context>

<pallas_src>
import functools

import jax
import jax.numpy as jnp
from jax.experimental import pallas as pl
from jax.experimental.pallas import tpu as pltpu


def _bottleneck_kernel(*refs, H, W, stride, connect, pad_w):
    if stride == 1:
        (x_ref, w1s_ref, wdws_ref, w3s_ref, pc_ref, b3_ref, mlr_ref,
         out_ref, pad_ref) = refs
        sel_ref = None
    else:
        (x_ref, w1s_ref, wdws_ref, w3s_ref, pc_ref, b3_ref, mlr_ref, sel_ref,
         out_ref, pad_ref) = refs

    HW = H * W
    Bt = pad_ref.shape[0]
    hidden = pad_ref.shape[1]

    # Per-channel BN biases / PReLU slopes, packed as columns of one (hidden, 4)
    # operand.  BN scales are already folded into the weights in the wrapper.
    b1 = pc_ref[:, 0:1]            # (hidden, 1)
    a1 = pc_ref[:, 1:2]
    b2 = pc_ref[:, 2:3]
    a2 = pc_ref[:, 3:4]
    b3 = b3_ref[...]               # (Cout, 1)

    w1s = w1s_ref[...]             # (hidden, Cin)   BN1 scale folded
    wdw = wdws_ref[...]            # (hidden, 9)     BN2 scale folded
    w3s = w3s_ref[...]             # (Cout, hidden)  BN3 scale folded

    # Zero only the two per-image 128-lane borders of the padded scratch (the
    # interior is fully overwritten below).  Re-done every grid step: the batch
    # axis is "parallel", so another core may start mid-grid with fresh scratch.
    zeros_border = jnp.zeros((Bt, hidden, pad_w), jnp.float32)
    pad_ref[:, :, pl.ds(0, pad_w)] = zeros_border
    pad_ref[:, :, pl.ds(pad_w + HW, pad_w)] = zeros_border

    # ---- 1x1 expansion on the MXU + bias + PReLU, written lane-aligned into scratch
    for b in range(Bt):
        hb = jnp.dot(w1s, x_ref[b], preferred_element_type=jnp.float32)  # (hidden, HW)
        hb = hb + b1
        hb = jnp.where(hb >= 0.0, hb, a1 * hb)
        pad_ref[b, :, pl.ds(pad_w, HW)] = hb

    # ---- 3x3 depthwise conv (padding=1) for all Bt images at once ----------------
    ml = mlr_ref[0:1, :]           # (1, HW) 0/1: dj = -1 taps valid (no column wrap)
    mr = mlr_ref[1:2, :]           # (1, HW) 0/1: dj = +1 taps valid

    acc = None
    for dj in (-1, 0, 1):          # group taps by dj -> each column mask applied once
        part = None
        for di in (-1, 0, 1):
            tap = (di + 1) * 3 + (dj + 1)
            shift = di * W + dj
            # Static lane-offset slice; row boundaries handled by the zero borders.
            win = pad_ref[:, :, pl.ds(pad_w + shift, HW)]     # (Bt, hidden, HW)
            contrib = win * wdw[:, tap:tap + 1]
            part = contrib if part is None else part + contrib
        if dj == -1:
            part = part * ml
        elif dj == 1:
            part = part * mr
        acc = part if acc is None else acc + part

    h2 = acc + b2
    h2 = jnp.where(h2 >= 0.0, h2, a2 * h2)                    # (Bt, hidden, HW)

    if stride != 1:
        sel = sel_ref[...]                                    # (HW, HoWo) 0/1

    # ---- (optional stride-2 downsample) + 1x1 projection on the MXU + bias (+res) -
    for b in range(Bt):
        h2b = h2[b]                                           # (hidden, HW)
        if stride != 1:
            # TODO(synk): replace this dense selection matmul with strided reads /
            # a row-blocked depthwise at production spatial sizes (sel grows as HW*HoWo).
            h2b = jnp.dot(h2b, sel, preferred_element_type=jnp.float32)   # (hidden, HoWo)
        yb = jnp.dot(w3s, h2b, preferred_element_type=jnp.float32)        # (Cout, HoWo)
        yb = yb + b3
        if connect:                      # static: stride == 1 and Cin == Cout
            yb = yb + x_ref[b]
        out_ref[b] = yb.astype(out_ref.dtype)


def _pick_batch_tile(B, hidden, HW, pad_w, cin, cout, howo):
    """Images per grid step: grow Bt to amortize per-step overhead, but keep at
    least 2 grid steps when possible (v7x megacore) and stay inside a modest
    per-step VMEM budget.  Bt always divides B."""
    per_img = 4 * (hidden * (HW + 2 * pad_w)        # padded depthwise scratch
                   + 4 * hidden * HW                # h / acc / h2 temporaries
                   + 2 * (cin * HW + cout * howo))  # double-buffered x / out blocks
    budget = 8 * 2**20
    bt = 1
    while (bt < 8 and B % (2 * bt) == 0 and B // (2 * bt) >= 2
           and 2 * bt * per_img <= budget):
        bt *= 2
    return bt
    # TODO(synk): when B == 1 (or odd) add a second "parallel" grid axis (hidden or
    # spatial row blocks) so both v7x TensorCores get work.


@functools.partial(jax.jit, static_argnames=("stride", "connect"))
def bottleneck_pallas(x_nchw, w1, s1, b1, a1, wdw, s2, b2, a2, w3, s3, b3,
                      *, stride, connect):
    B, Cin, H, W = x_nchw.shape
    hidden = w1.shape[1]
    Cout = w3.shape[1]
    Ho = (H + 2 - 3) // stride + 1
    Wo = (W + 2 - 3) // stride + 1
    HW, HoWo = H * W, Ho * Wo
    pad_w = max(128, ((W + 1 + 127) // 128) * 128)   # lane-aligned zero-border width

    f32 = jnp.float32
    # Free relayout only: NCHW -> (B, C, H*W).
    x_flat = x_nchw.reshape(B, Cin, HW).astype(f32)

    # Fold inference-mode BN scales into the conv weights (tiny tensors -> wrapper
    # cost negligible); only biases + PReLU slopes go into the kernel.
    s1c = s1.reshape(hidden, 1).astype(f32); b1c = b1.reshape(hidden, 1).astype(f32)
    a1c = a1.reshape(hidden, 1).astype(f32)
    s2c = s2.reshape(hidden, 1).astype(f32); b2c = b2.reshape(hidden, 1).astype(f32)
    a2c = a2.reshape(hidden, 1).astype(f32)
    s3c = s3.reshape(Cout, 1).astype(f32);   b3c = b3.reshape(Cout, 1).astype(f32)

    w1s = jnp.asarray(w1, f32).T * s1c                   # (hidden, Cin)
    wdws = jnp.asarray(wdw, f32).T * s2c                 # (hidden, 9)
    w3s = jnp.asarray(w3, f32).T * s3c                   # (Cout, hidden)

    pc = jnp.concatenate([b1c, a1c, b2c, a2c], axis=1)   # (hidden, 4) packed params

    # Column-wrap masks for the depthwise taps (no in-kernel iota / mod), packed.
    col = jnp.arange(HW, dtype=jnp.int32) % W
    mlr = jnp.stack([(col > 0).astype(f32), (col < W - 1).astype(f32)], axis=0)  # (2, HW)

    Bt = _pick_batch_tile(B, hidden, HW, pad_w, Cin, Cout, HoWo)
    grid = (B // Bt,)

    inputs = [x_flat, w1s, wdws, w3s, pc, b3c, mlr]
    in_specs = [pl.BlockSpec((Bt, Cin, HW), lambda b: (b, 0, 0))]
    # Grid-invariant operands: full blocks with a constant index map.
    in_specs += [pl.BlockSpec(a.shape, lambda b: (0, 0)) for a in inputs[1:]]

    if stride != 1:
        src = (jnp.arange(Ho) * stride)[:, None] * W + (jnp.arange(Wo) * stride)[None, :]
        sel = (jnp.arange(HW)[:, None] == src.reshape(-1)[None, :]).astype(f32)  # (HW, HoWo)
        inputs.append(sel)
        in_specs.append(pl.BlockSpec(sel.shape, lambda b: (0, 0)))

    kernel = functools.partial(_bottleneck_kernel, H=H, W=W, stride=stride,
                               connect=connect, pad_w=pad_w)

    flops = B * (2 * HW * Cin * hidden + 18 * HW * hidden + 2 * HoWo * hidden * Cout
                 + (2 * HW * HoWo * hidden if stride != 1 else 0))
    bytes_accessed = 4 * (B * Cin * HW + B * Cout * HoWo
                          + sum(int(a.size) for a in inputs[1:]))   # includes sel

    # VMEM limit from the real working set, capped at half the physical VMEM of the
    # current TPU generation (64 MiB/TC on v7x, 128 MiB on v5e/v6e).
    scratch_bytes = 4 * Bt * hidden * (HW + 2 * pad_w)
    block_bytes = 2 * 4 * Bt * (Cin * HW + Cout * HoWo)             # double-buffered x/out
    inv_bytes = 2 * 4 * sum(int(a.size) for a in inputs[1:])        # double-buffered invariants
    temp_bytes = 4 * Bt * hidden * HW * 4                           # h / acc / h2 headroom
    ws = scratch_bytes + block_bytes + inv_bytes + temp_bytes
    try:
        phys_vmem = int(getattr(pltpu.get_tpu_info(), "vmem_capacity_bytes",
                                64 * 2**20))
    except Exception:
        phys_vmem = 64 * 2**20
    vmem_limit = int(min(max(2 * ws, 8 * 2**20), max(phys_vmem // 2, 16 * 2**20)))

    out = pl.pallas_call(
        kernel,
        out_shape=jax.ShapeDtypeStruct((B, Cout, HoWo), f32),
        grid_spec=pltpu.PrefetchScalarGridSpec(
            num_scalar_prefetch=0,
            grid=grid,
            in_specs=in_specs,
            out_specs=pl.BlockSpec((Bt, Cout, HoWo), lambda b: (b, 0, 0)),
            scratch_shapes=[pltpu.VMEM((Bt, hidden, HW + 2 * pad_w), f32)],
        ),
        compiler_params=pltpu.CompilerParams(
            dimension_semantics=("parallel",),
            vmem_limit_bytes=vmem_limit),
        cost_estimate=pl.CostEstimate(flops=flops, transcendentals=0,
                                      bytes_accessed=bytes_accessed),
    )(*inputs)

    # Output is already channel-major; only a free reshape back to NCHW.
    return out.reshape(B, Cout, Ho, Wo)


def init_params(key, inp, oup, expansion):
    hidden = inp * expansion
    ks = jax.random.split(key, 6)
    w1 = 0.1 * jax.random.normal(ks[0], (inp, hidden), jnp.float32)    # 1x1 expand
    wdw = 0.1 * jax.random.normal(ks[1], (9, hidden), jnp.float32)     # 3x3 depthwise
    w3 = 0.1 * jax.random.normal(ks[2], (hidden, oup), jnp.float32)    # 1x1 project

    def bn(k, c):
        kg, kb, km, kv = jax.random.split(k, 4)
        gamma = 1.0 + 0.1 * jax.random.normal(kg, (c,), jnp.float32)
        beta = 0.1 * jax.random.normal(kb, (c,), jnp.float32)
        mean = 0.1 * jax.random.normal(km, (c,), jnp.float32)
        var = jnp.abs(jax.random.normal(kv, (c,), jnp.float32)) + 0.5
        scale = gamma / jnp.sqrt(var + 1e-5)                 # PyTorch BN eps
        bias = beta - mean * scale
        return scale.reshape(1, c), bias.reshape(1, c)

    s1, b1 = bn(ks[3], hidden)
    s2, b2 = bn(ks[4], hidden)
    s3, b3 = bn(ks[5], oup)
    a1 = jnp.full((1, hidden), 0.25, jnp.float32)            # PReLU default init
    a2 = jnp.full((1, hidden), 0.25, jnp.float32)
    return dict(w1=w1, s1=s1, b1=b1, a1=a1, wdw=wdw, s2=s2, b2=b2, a2=a2,
                w3=w3, s3=s3, b3=b3)


def reference_forward(x_nchw, p, *, stride, connect):
    """Pure-JAX reference (same math, no Pallas)."""
    x = jnp.transpose(x_nchw, (0, 2, 3, 1)).astype(jnp.float32)   # NHWC
    B, H, W, _ = x.shape
    h = jnp.einsum('bhwc,ce->bhwe', x, p['w1'])
    h = h * p['s1'] + p['b1']
    h = jnp.where(h >= 0, h, p['a1'] * h)
    hp = jnp.pad(h, ((0, 0), (1, 1), (1, 1), (0, 0)))
    Ho = (H + 2 - 3) // stride + 1
    Wo = (W + 2 - 3) // stride + 1
    acc = 0.0
    for i in range(3):
        for j in range(3):
            win = hp[:, i:i + stride * (Ho - 1) + 1:stride,
                     j:j + stride * (Wo - 1) + 1:stride, :]
            acc = acc + win * p['wdw'][i * 3 + j]
    h2 = acc * p['s2'] + p['b2']
    h2 = jnp.where(h2 >= 0, h2, p['a2'] * h2)
    y = jnp.einsum('bhwe,eo->bhwo', h2, p['w3'])
    y = y * p['s3'] + p['b3']
    if connect:
        y = y + x
    return jnp.transpose(y, (0, 3, 1, 2))


if __name__ == "__main__":
    key = jax.random.PRNGKey(0)
    kx, kp = jax.random.split(key)

    B, inp, H, W = 4, 4, 16, 16          # B=4 exercises Bt=2 per step with 2 parallel steps
    oup, expansion = 4, 4

    x = jax.random.normal(kx, (B, inp, H, W), jnp.float32)
    p = init_params(kp, inp, oup, expansion)

    # stride = 1 (residual 'connect' path)
    stride = 1
    connect = (stride == 1 and inp == oup)
    out1 = bottleneck_pallas(
        x, p['w1'], p['s1'], p['b1'], p['a1'],
        p['wdw'], p['s2'], p['b2'], p['a2'],
        p['w3'], p['s3'], p['b3'],
        stride=stride, connect=connect)
    out1 = jax.block_until_ready(out1)
    ref1 = reference_forward(x, p, stride=stride, connect=connect)
    assert out1.shape == ref1.shape, (out1.shape, ref1.shape)
    assert bool(jnp.allclose(out1, ref1, atol=1e-4, rtol=1e-4)), \
        float(jnp.max(jnp.abs(out1 - ref1)))

    # stride = 2 (downsampling block, no residual)
    stride = 2
    connect = (stride == 1 and inp == oup)
    out2 = bottleneck_pallas(
        x, p['w1'], p['s1'], p['b1'], p['a1'],
        p['wdw'], p['s2'], p['b2'], p['a2'],
        p['w3'], p['s3'], p['b3'],
        stride=stride, connect=connect)
    out2 = jax.block_until_ready(out2)
    ref2 = reference_forward(x, p, stride=stride, connect=connect)
    assert out2.shape == ref2.shape, (out2.shape, ref2.shape)
    assert bool(jnp.allclose(out2, ref2, atol=1e-4, rtol=1e-4)), \
        float(jnp.max(jnp.abs(out2 - ref2)))

    print("KERNEL_OK")
</pallas_src>

<mosaic_0001>
module attributes {stable_mosaic.version = 11 : i64} {
  func.func @_bottleneck_kernel(%arg0: i32, %arg1: memref<2x4x256xf32, #tpu.memory_space<vmem>>, %arg2: memref<16x4xf32, #tpu.memory_space<vmem>>, %arg3: memref<16x9xf32, #tpu.memory_space<vmem>>, %arg4: memref<4x16xf32, #tpu.memory_space<vmem>>, %arg5: memref<16x4xf32, #tpu.memory_space<vmem>>, %arg6: memref<4x1xf32, #tpu.memory_space<vmem>>, %arg7: memref<2x256xf32, #tpu.memory_space<vmem>>, %arg8: memref<2x4x256xf32, #tpu.memory_space<vmem>>, %arg9: memref<2x16x512xf32, #tpu.memory_space<vmem>>) attributes {dimension_semantics = [#tpu.dimension_semantics<parallel>], iteration_bounds = array<i64: 2>, scalar_prefetch = 0 : i64, scratch_operands = 1 : i64, tpu.core_type = #tpu.core_type<tc>, window_params = [{transform_indices = @transform_0, window_bounds = array<i64: 2, 4, 256>}, {pipeline_mode = #tpu.pipeline_mode<synchronous>, transform_indices = @transform_1, window_bounds = array<i64: 16, 4>}, {pipeline_mode = #tpu.pipeline_mode<synchronous>, transform_indices = @transform_2, window_bounds = array<i64: 16, 9>}, {pipeline_mode = #tpu.pipeline_mode<synchronous>, transform_indices = @transform_3, window_bounds = array<i64: 4, 16>}, {pipeline_mode = #tpu.pipeline_mode<synchronous>, transform_indices = @transform_4, window_bounds = array<i64: 16, 4>}, {pipeline_mode = #tpu.pipeline_mode<synchronous>, transform_indices = @transform_5, window_bounds = array<i64: 4, 1>}, {pipeline_mode = #tpu.pipeline_mode<synchronous>, transform_indices = @transform_6, window_bounds = array<i64: 2, 256>}, {transform_indices = @transform_7, window_bounds = array<i64: 2, 4, 256>}]} {
    %c0 = arith.constant 0 : index
    %c0_0 = arith.constant 0 : index
    %0 = vector.load %arg5[%c0, %c0_0] : memref<16x4xf32, #tpu.memory_space<vmem>>, vector<16x1xf32>
    %c0_1 = arith.constant 0 : index
    %c1 = arith.constant 1 : index
    %1 = vector.load %arg5[%c0_1, %c1] : memref<16x4xf32, #tpu.memory_space<vmem>>, vector<16x1xf32>
    %c0_2 = arith.constant 0 : index
    %c2 = arith.constant 2 : index
    %2 = vector.load %arg5[%c0_2, %c2] : memref<16x4xf32, #tpu.memory_space<vmem>>, vector<16x1xf32>
    %c0_3 = arith.constant 0 : index
    %c3 = arith.constant 3 : index
    %3 = vector.load %arg5[%c0_3, %c3] : memref<16x4xf32, #tpu.memory_space<vmem>>, vector<16x1xf32>
    %c0_4 = arith.constant 0 : index
    %c0_5 = arith.constant 0 : index
    %4 = vector.load %arg6[%c0_4, %c0_5] : memref<4x1xf32, #tpu.memory_space<vmem>>, vector<4x1xf32>
    %c0_6 = arith.constant 0 : index
    %c0_7 = arith.constant 0 : index
    %5 = vector.load %arg2[%c0_6, %c0_7] : memref<16x4xf32, #tpu.memory_space<vmem>>, vector<16x4xf32>
    %c0_8 = arith.constant 0 : index
    %c0_9 = arith.constant 0 : index
    %6 = vector.load %arg3[%c0_8, %c0_9] : memref<16x9xf32, #tpu.memory_space<vmem>>, vector<16x9xf32>
    %c0_10 = arith.constant 0 : index
    %c0_11 = arith.constant 0 : index
    %7 = vector.load %arg4[%c0_10, %c0_11] : memref<4x16xf32, #tpu.memory_space<vmem>>, vector<4x16xf32>
    %cst = arith.constant 0.000000e+00 : f32
    %8 = vector.broadcast %cst : f32 to vector<2x16x128xf32>
    %c0_12 = arith.constant 0 : index
    %c0_13 = arith.constant 0 : index
    %c0_14 = arith.constant 0 : index
    %9 = vector.load %arg9[%c0_12, %c0_13, %c0_14] : memref<2x16x512xf32, #tpu.memory_space<vmem>>, vector<2x16x128xf32>
    tpu.vector_store %arg9[%c0_12, %c0_13, %c0_14], %8 {strides = array<i32>} : memref<2x16x512xf32, #tpu.memory_space<vmem>>, vector<2x16x128xf32>,
    %c0_15 = arith.constant 0 : index
    %c0_16 = arith.constant 0 : index
    %c384 = arith.constant 384 : index
    %10 = vector.load %arg9[%c0_15, %c0_16, %c384] : memref<2x16x512xf32, #tpu.memory_space<vmem>>, vector<2x16x128xf32>
    tpu.vector_store %arg9[%c0_15, %c0_16, %c384], %8 {strides = array<i32>} : memref<2x16x512xf32, #tpu.memory_space<vmem>>, vector<2x16x128xf32>,
    %c0_17 = arith.constant 0 : index
    %c0_18 = arith.constant 0 : index
    %c0_19 = arith.constant 0 : index
    %11 = vector.load %arg1[%c0_17, %c0_18, %c0_19] : memref<2x4x256xf32, #tpu.memory_space<vmem>>, vector<1x4x256xf32>
    %12 = vector.shape_cast %11 : vector<1x4x256xf32> to vector<4x256xf32>
    %cst_20 = arith.constant dense<0.000000e+00> : vector<16x256xf32>
    %13 = tpu.matmul %5, %12, %cst_20 {dimension_numbers = #tpu.dot_dimension_numbers<[1], [0], [0], [1], [0, 0, 1, 1], [], []>} : vector<16x4xf32>, vector<4x256xf32>, vector<16x256xf32> -> vector<16x256xf32>
    %14 = vector.broadcast %0 : vector<16x1xf32> to vector<16x256xf32>
    %15 = arith.addf %13, %14 : vector<16x256xf32>
    %cst_21 = arith.constant 0.000000e+00 : f32
    %16 = vector.broadcast %cst_21 : f32 to vector<16x256xf32>
    %17 = arith.cmpf oge, %15, %16 : vector<16x256xf32>
    %18 = vector.broadcast %1 : vector<16x1xf32> to vector<16x256xf32>
    %19 = arith.mulf %18, %15 : vector<16x256xf32>
    %20 = arith.select %17, %15, %19 : vector<16x256xi1>, vector<16x256xf32>
    %c0_22 = arith.constant 0 : index
    %c0_23 = arith.constant 0 : index
    %c128 = arith.constant 128 : index
    %21 = vector.load %arg9[%c0_22, %c0_23, %c128] : memref<2x16x512xf32, #tpu.memory_space<vmem>>, vector<1x16x256xf32>
    %22 = vector.shape_cast %21 : vector<1x16x256xf32> to vector<16x256xf32>
    %23 = vector.shape_cast %20 : vector<16x256xf32> to vector<1x16x256xf32>
    tpu.vector_store %arg9[%c0_22, %c0_23, %c128], %23 {strides = array<i32>} : memref<2x16x512xf32, #tpu.memory_space<vmem>>, vector<1x16x256xf32>,
    %c1_24 = arith.constant 1 : index
    %c0_25 = arith.constant 0 : index
    %c0_26 = arith.constant 0 : index
    %24 = vector.load %arg1[%c1_24, %c0_25, %c0_26] : memref<2x4x256xf32, #tpu.memory_space<vmem>>, vector<1x4x256xf32>
    %25 = vector.shape_cast %24 : vector<1x4x256xf32> to vector<4x256xf32>
    %cst_27 = arith.constant dense<0.000000e+00> : vector<16x256xf32>
    %26 = tpu.matmul %5, %25, %cst_27 {dimension_numbers = #tpu.dot_dimension_numbers<[1], [0], [0], [1], [0, 0, 1, 1], [], []>} : vector<16x4xf32>, vector<4x256xf32>, vector<16x256xf32> -> vector<16x256xf32>
    %27 = vector.broadcast %0 : vector<16x1xf32> to vector<16x256xf32>
    %28 = arith.addf %26, %27 : vector<16x256xf32>
    %cst_28 = arith.constant 0.000000e+00 : f32
    %29 = vector.broadcast %cst_28 : f32 to vector<16x256xf32>
    %30 = arith.cmpf oge, %28, %29 : vector<16x256xf32>
    %31 = vector.broadcast %1 : vector<16x1xf32> to vector<16x256xf32>
    %32 = arith.mulf %31, %28 : vector<16x256xf32>
    %33 = arith.select %30, %28, %32 : vector<16x256xi1>, vector<16x256xf32>
    %c1_29 = arith.constant 1 : index
    %c0_30 = arith.constant 0 : index
    %c128_31 = arith.constant 128 : index
    %34 = vector.load %arg9[%c1_29, %c0_30, %c128_31] : memref<2x16x512xf32, #tpu.memory_space<vmem>>, vector<1x16x256xf32>
    %35 = vector.shape_cast %34 : vector<1x16x256xf32> to vector<16x256xf32>
    %36 = vector.shape_cast %33 : vector<16x256xf32> to vector<1x16x256xf32>
    tpu.vector_store %arg9[%c1_29, %c0_30, %c128_31], %36 {strides = array<i32>} : memref<2x16x512xf32, #tpu.memory_space<vmem>>, vector<1x16x256xf32>,
    %c0_32 = arith.constant 0 : index
    %c0_33 = arith.constant 0 : index
    %37 = vector.load %arg7[%c0_32, %c0_33] : memref<2x256xf32, #tpu.memory_space<vmem>>, vector<1x256xf32>
    %c1_34 = arith.constant 1 : index
    %c0_35 = arith.constant 0 : index
    %38 = vector.load %arg7[%c1_34, %c0_35] : memref<2x256xf32, #tpu.memory_space<vmem>>, vector<1x256xf32>
    %c0_36 = arith.constant 0 : index
    %c0_37 = arith.constant 0 : index
    %c111 = arith.constant 111 : index
    %39 = vector.load %arg9[%c0_36, %c0_37, %c111] : memref<2x16x512xf32, #tpu.memory_space<vmem>>, vector<2x16x256xf32>
    %40 = vector.extract_strided_slice %6 {offsets = [0, 0], sizes = [16, 1], strides = [1, 1]} : vector<16x9xf32> to vector<16x1xf32>
    %41 = vector.shape_cast %40 : vector<16x1xf32> to vector<1x16x1xf32>
    %42 = vector.broadcast %41 : vector<1x16x1xf32> to vector<2x16x256xf32>
    %43 = arith.mulf %39, %42 : vector<2x16x256xf32>
    %c0_38 = arith.constant 0 : index
    %c0_39 = arith.constant 0 : index
    %c127 = arith.constant 127 : index
    %44 = vector.load %arg9[%c0_38, %c0_39, %c127] : memref<2x16x512xf32, #tpu.memory_space<vmem>>, vector<2x16x256xf32>
    %45 = vector.extract_strided_slice %6 {offsets = [0, 3], sizes = [16, 1], strides = [1, 1]} : vector<16x9xf32> to vector<16x1xf32>
    %46 = vector.shape_cast %45 : vector<16x1xf32> to vector<1x16x1xf32>
    %47 = vector.broadcast %46 : vector<1x16x1xf32> to vector<2x16x256xf32>
    %48 = arith.mulf %44, %47 : vector<2x16x256xf32>
    %49 = arith.addf %43, %48 : vector<2x16x256xf32>
    %c0_40 = arith.constant 0 : index
    %c0_41 = arith.constant 0 : index
    %c143 = arith.constant 143 : index
    %50 = vector.load %arg9[%c0_40, %c0_41, %c143] : memref<2x16x512xf32, #tpu.memory_space<vmem>>, vector<2x16x256xf32>
    %51 = vector.extract_strided_slice %6 {offsets = [0, 6], sizes = [16, 1], strides = [1, 1]} : vector<16x9xf32> to vector<16x1xf32>
    %52 = vector.shape_cast %51 : vector<16x1xf32> to vector<1x16x1xf32>
    %53 = vector.broadcast %52 : vector<1x16x1xf32> to vector<2x16x256xf32>
    %54 = arith.mulf %50, %53 : vector<2x16x256xf32>
    %55 = arith.addf %49, %54 : vector<2x16x256xf32>
    %56 = vector.shape_cast %37 : vector<1x256xf32> to vector<1x1x256xf32>
    %57 = vector.broadcast %56 : vector<1x1x256xf32> to vector<2x16x256xf32>
    %58 = arith.mulf %55, %57 : vector<2x16x256xf32>
    %c0_42 = arith.constant 0 : index
    %c0_43 = arith.constant 0 : index
    %c112 = arith.constant 112 : index
    %59 = vector.load %arg9[%c0_42, %c0_43, %c112] : memref<2x16x512xf32, #tpu.memory_space<vmem>>, vector<2x16x256xf32>
    %60 = vector.extract_strided_slice %6 {offsets = [0, 1], sizes = [16, 1], strides = [1, 1]} : vector<16x9xf32> to vector<16x1xf32>
    %61 = vector.shape_cast %60 : vector<16x1xf32> to vector<1x16x1xf32>
    %62 = vector.broadcast %61 : vector<1x16x1xf32> to vector<2x16x256xf32>
    %63 = arith.mulf %59, %62 : vector<2x16x256xf32>
    %c0_44 = arith.constant 0 : index
    %c0_45 = arith.constant 0 : index
    %c128_46 = arith.constant 128 : index
    %64 = vector.load %arg9[%c0_44, %c0_45, %c128_46] : memref<2x16x512xf32, #tpu.memory_space<vmem>>, vector<2x16x256xf32>
    %65 = vector.extract_strided_slice %6 {offsets = [0, 4], sizes = [16, 1], strides = [1, 1]} : vector<16x9xf32> to vector<16x1xf32>
    %66 = vector.shape_cast %65 : vector<16x1xf32> to vector<1x16x1xf32>
    %67 = vector.broadcast %66 : vector<1x16x1xf32> to vector<2x16x256xf32>
    %68 = arith.mulf %64, %67 : vector<2x16x256xf32>
    %69 = arith.addf %63, %68 : vector<2x16x256xf32>
    %c0_47 = arith.constant 0 : index
    %c0_48 = arith.constant 0 : index
    %c144 = arith.constant 144 : index
    %70 = vector.load %arg9[%c0_47, %c0_48, %c144] : memref<2x16x512xf32, #tpu.memory_space<vmem>>, vector<2x16x256xf32>
    %71 = vector.extract_strided_slice %6 {offsets = [0, 7], sizes = [16, 1], strides = [1, 1]} : vector<16x9xf32> to vector<16x1xf32>
    %72 = vector.shape_cast %71 : vector<16x1xf32> to vector<1x16x1xf32>
    %73 = vector.broadcast %72 : vector<1x16x1xf32> to vector<2x16x256xf32>
    %74 = arith.mulf %70, %73 : vector<2x16x256xf32>
    %75 = arith.addf %69, %74 : vector<2x16x256xf32>
    %76 = arith.addf %58, %75 : vector<2x16x256xf32>
    %c0_49 = arith.constant 0 : index
    %c0_50 = arith.constant 0 : index
    %c113 = arith.constant 113 : index
    %77 = vector.load %arg9[%c0_49, %c0_50, %c113] : memref<2x16x512xf32, #tpu.memory_space<vmem>>, vector<2x16x256xf32>
    %78 = vector.extract_strided_slice %6 {offsets = [0, 2], sizes = [16, 1], strides = [1, 1]} : vector<16x9xf32> to vector<16x1xf32>
    %79 = vector.shape_cast %78 : vector<16x1xf32> to vector<1x16x1xf32>
    %80 = vector.broadcast %79 : vector<1x16x1xf32> to vector<2x16x256xf32>
    %81 = arith.mulf %77, %80 : vector<2x16x256xf32>
    %c0_51 = arith.constant 0 : index
    %c0_52 = arith.constant 0 : index
    %c129 = arith.constant 129 : index
    %82 = vector.load %arg9[%c0_51, %c0_52, %c129] : memref<2x16x512xf32, #tpu.memory_space<vmem>>, vector<2x16x256xf32>
    %83 = vector.extract_strided_slice %6 {offsets = [0, 5], sizes = [16, 1], strides = [1, 1]} : vector<16x9xf32> to vector<16x1xf32>
    %84 = vector.shape_cast %83 : vector<16x1xf32> to vector<1x16x1xf32>
    %85 = vector.broadcast %84 : vector<1x16x1xf32> to vector<2x16x256xf32>
    %86 = arith.mulf %82, %85 : vector<2x16x256xf32>
    %87 = arith.addf %81, %86 : vector<2x16x256xf32>
    %c0_53 = arith.constant 0 : index
    %c0_54 = arith.constant 0 : index
    %c145 = arith.constant 145 : index
    %88 = vector.load %arg9[%c0_53, %c0_54, %c145] : memref<2x16x512xf32, #tpu.memory_space<vmem>>, vector<2x16x256xf32>
    %89 = vector.extract_strided_slice %6 {offsets = [0, 8], sizes = [16, 1], strides = [1, 1]} : vector<16x9xf32> to vector<16x1xf32>
    %90 = vector.shape_cast %89 : vector<16x1xf32> to vector<1x16x1xf32>
    %91 = vector.broadcast %90 : vector<1x16x1xf32> to vector<2x16x256xf32>
    %92 = arith.mulf %88, %91 : vector<2x16x256xf32>
    %93 = arith.addf %87, %92 : vector<2x16x256xf32>
    %94 = vector.shape_cast %38 : vector<1x256xf32> to vector<1x1x256xf32>
    %95 = vector.broadcast %94 : vector<1x1x256xf32> to vector<2x16x256xf32>
    %96 = arith.mulf %93, %95 : vector<2x16x256xf32>
    %97 = arith.addf %76, %96 : vector<2x16x256xf32>
    %98 = vector.shape_cast %2 : vector<16x1xf32> to vector<1x16x1xf32>
    %99 = vector.broadcast %98 : vector<1x16x1xf32> to vector<2x16x256xf32>
    %100 = arith.addf %97, %99 : vector<2x16x256xf32>
    %cst_55 = arith.constant 0.000000e+00 : f32
    %101 = vector.broadcast %cst_55 : f32 to vector<2x16x256xf32>
    %102 = arith.cmpf oge, %100, %101 : vector<2x16x256xf32>
    %103 = vector.shape_cast %3 : vector<16x1xf32> to vector<1x16x1xf32>
    %104 = vector.broadcast %103 : vector<1x16x1xf32> to vector<2x16x256xf32>
    %105 = arith.mulf %104, %100 : vector<2x16x256xf32>
    %106 = arith.select %102, %100, %105 : vector<2x16x256xi1>, vector<2x16x256xf32>
    %107 = vector.extract_strided_slice %106 {offsets = [0, 0, 0], sizes = [1, 16, 256], strides = [1, 1, 1]} : vector<2x16x256xf32> to vector<1x16x256xf32>
    %108 = vector.shape_cast %107 : vector<1x16x256xf32> to vector<16x256xf32>
    %cst_56 = arith.constant dense<0.000000e+00> : vector<4x256xf32>
    %109 = tpu.matmul %7, %108, %cst_56 {dimension_numbers = #tpu.dot_dimension_numbers<[1], [0], [0], [1], [0, 0, 1, 1], [], []>} : vector<4x16xf32>, vector<16x256xf32>, vector<4x256xf32> -> vector<4x256xf32>
    %110 = vector.broadcast %4 : vector<4x1xf32> to vector<4x256xf32>
    %111 = arith.addf %109, %110 : vector<4x256xf32>
    %c0_57 = arith.constant 0 : index
    %c0_58 = arith.constant 0 : index
    %c0_59 = arith.constant 0 : index
    %112 = vector.load %arg1[%c0_57, %c0_58, %c0_59] : memref<2x4x256xf32, #tpu.memory_space<vmem>>, vector<1x4x256xf32>
    %113 = vector.shape_cast %112 : vector<1x4x256xf32> to vector<4x256xf32>
    %114 = arith.addf %111, %113 : vector<4x256xf32>
    %c0_60 = arith.constant 0 : index
    %c0_61 = arith.constant 0 : index
    %c0_62 = arith.constant 0 : index
    %115 = vector.load %arg8[%c0_60, %c0_61, %c0_62] : memref<2x4x256xf32, #tpu.memory_space<vmem>>, vector<1x4x256xf32>
    %116 = vector.shape_cast %115 : vector<1x4x256xf32> to vector<4x256xf32>
    %117 = vector.shape_cast %114 : vector<4x256xf32> to vector<1x4x256xf32>
    tpu.vector_store %arg8[%c0_60, %c0_61, %c0_62], %117 {strides = array<i32>} : memref<2x4x256xf32, #tpu.memory_space<vmem>>, vector<1x4x256xf32>,
    %118 = vector.extract_strided_slice %106 {offsets = [1, 0, 0], sizes = [1, 16, 256], strides = [1, 1, 1]} : vector<2x16x256xf32> to vector<1x16x256xf32>
    %119 = vector.shape_cast %118 : vector<1x16x256xf32> to vector<16x256xf32>
    %cst_63 = arith.constant dense<0.000000e+00> : vector<4x256xf32>
    %120 = tpu.matmul %7, %119, %cst_63 {dimension_numbers = #tpu.dot_dimension_numbers<[1], [0], [0], [1], [0, 0, 1, 1], [], []>} : vector<4x16xf32>, vector<16x256xf32>, vector<4x256xf32> -> vector<4x256xf32>
    %121 = vector.broadcast %4 : vector<4x1xf32> to vector<4x256xf32>
    %122 = arith.addf %120, %121 : vector<4x256xf32>
    %c1_64 = arith.constant 1 : index
    %c0_65 = arith.constant 0 : index
    %c0_66 = arith.constant 0 : index
    %123 = vector.load %arg1[%c1_64, %c0_65, %c0_66] : memref<2x4x256xf32, #tpu.memory_space<vmem>>, vector<1x4x256xf32>
    %124 = vector.shape_cast %123 : vector<1x4x256xf32> to vector<4x256xf32>
    %125 = arith.addf %122, %124 : vector<4x256xf32>
    %c1_67 = arith.constant 1 : index
    %c0_68 = arith.constant 0 : index
    %c0_69 = arith.constant 0 : index
    %126 = vector.load %arg8[%c1_67, %c0_68, %c0_69] : memref<2x4x256xf32, #tpu.memory_space<vmem>>, vector<1x4x256xf32>
    %127 = vector.shape_cast %126 : vector<1x4x256xf32> to vector<4x256xf32>
    %128 = vector.shape_cast %125 : vector<4x256xf32> to vector<1x4x256xf32>
    tpu.vector_store %arg8[%c1_67, %c0_68, %c0_69], %128 {strides = array<i32>} : memref<2x4x256xf32, #tpu.memory_space<vmem>>, vector<1x4x256xf32>,
    return
  }
  func.func @transform_0(%arg0: i32) -> (i32, i32, i32) {
    %c0_i32 = arith.constant 0 : i32
    %c0_i32_0 = arith.constant 0 : i32
    %c0_i32_1 = arith.constant 0 : i32
    return %arg0, %c0_i32, %c0_i32_0 : i32, i32, i32
  }
  func.func @transform_1(%arg0: i32) -> (i32, i32) {
    %c0_i32 = arith.constant 0 : i32
    %c0_i32_0 = arith.constant 0 : i32
    %c0_i32_1 = arith.constant 0 : i32
    return %c0_i32, %c0_i32_0 : i32, i32
  }
  func.func @transform_2(%arg0: i32) -> (i32, i32) {
    %c0_i32 = arith.constant 0 : i32
    %c0_i32_0 = arith.constant 0 : i32
    %c0_i32_1 = arith.constant 0 : i32
    return %c0_i32, %c0_i32_0 : i32, i32
  }
  func.func @transform_3(%arg0: i32) -> (i32, i32) {
    %c0_i32 = arith.constant 0 : i32
    %c0_i32_0 = arith.constant 0 : i32
    %c0_i32_1 = arith.constant 0 : i32
    return %c0_i32, %c0_i32_0 : i32, i32
  }
  func.func @transform_4(%arg0: i32) -> (i32, i32) {
    %c0_i32 = arith.constant 0 : i32
    %c0_i32_0 = arith.constant 0 : i32
    %c0_i32_1 = arith.constant 0 : i32
    return %c0_i32, %c0_i32_0 : i32, i32
  }
  func.func @transform_5(%arg0: i32) -> (i32, i32) {
    %c0_i32 = arith.constant 0 : i32
    %c0_i32_0 = arith.constant 0 : i32
    %c0_i32_1 = arith.constant 0 : i32
    return %c0_i32, %c0_i32_0 : i32, i32
  }
  func.func @transform_6(%arg0: i32) -> (i32, i32) {
    %c0_i32 = arith.constant 0 : i32
    %c0_i32_0 = arith.constant 0 : i32
    %c0_i32_1 = arith.constant 0 : i32
    return %c0_i32, %c0_i32_0 : i32, i32
  }
  func.func @transform_7(%arg0: i32) -> (i32, i32, i32) {
    %c0_i32 = arith.constant 0 : i32
    %c0_i32_0 = arith.constant 0 : i32
    %c0_i32_1 = arith.constant 0 : i32
    return %arg0, %c0_i32, %c0_i32_0 : i32, i32, i32
  }
}

</mosaic_0001>

<llo_original>
// kernel: bottleneck_pallas.1
$region0: #{bottleneck_pallas.1}
  #allocation0 [shape = 'u32[]', space=smem, size = 0x4, offset = 0x4, fixed_abs, tag = 'smem constant byte address 0x4 - core index']
  #allocation1 [shape = 'u32[144,128]{1,0:T(1,128)}', space=vmem, size = 0x12000, scoped, tag = 'internal scratch']
  #allocation2 [shape = 'f32[2,16,512]{2,1,0:T(8,128)}', space=vmem, size = 0x10000, scoped, tag = 'scratch operand']
  %s0 = inlined_call_operand.vmem [shape: f32[4,4,256], index: 0, kind: input, shape index: {}]
  %s1 = inlined_call_operand.vmem [shape: f32[16,4], index: 1, kind: input, shape index: {}]
  %s2 = inlined_call_operand.vmem [shape: f32[16,9], index: 2, kind: input, shape index: {}]
  %s3 = inlined_call_operand.vmem [shape: f32[4,16], index: 3, kind: input, shape index: {}]
  %s4 = inlined_call_operand.vmem [shape: f32[16,4], index: 4, kind: input, shape index: {}]
  %s5 = inlined_call_operand.vmem [shape: f32[4,1], index: 5, kind: input, shape index: {}]
  %s6 = inlined_call_operand.vmem [shape: f32[2,256], index: 6, kind: input, shape index: {}]
  %s7 = inlined_call_operand.vmem [shape: f32[4,4,256], index: 7, kind: output, shape index: {}]
  %s8 = sld [smem:[#allocation0]]
  $region61: #{bottleneck_pallas.1} parent=0
    _
  %s10 = ssub.s32 1, %s8
  %s11 = scalar_select 0, %s10, %s8
  loop: start=0, step=1, limit=4
  $region2: #{bottleneck_pallas.1} parent=0 // loop_pre_header
    _
  $region3: #{bottleneck_pallas.1} parent=0 // loop_header
    %s13 = sphi 0, %s17
    %p14 = scmp.ge.s32.totalorder %s13, 4
    %s23 = sphi 0, %s25
    %s26 = sphi 0, %s23
    %s27 = sphi 0, %s26
    %s43 = sphi 0, %s27
    %s47 = sphi 0, %s47
    %s49 = sphi 0, %s47
    %s50 = sphi 0, %s49
    %s64 = sphi 0, %s50
    %s68 = sphi 0, %s68
    %s70 = sphi 0, %s68
    %s71 = sphi 0, %s70
    %s85 = sphi 0, %s71
    %s89 = sphi 0, %s89
    %s91 = sphi 0, %s89
    %s92 = sphi 0, %s91
    %s106 = sphi 0, %s92
    %s110 = sphi 0, %s110
    %s112 = sphi 0, %s110
    %s113 = sphi 0, %s112
    %s127 = sphi 0, %s113
    %s131 = sphi 0, %s131
    %s133 = sphi 0, %s131
    %s134 = sphi 0, %s133
    %s148 = sphi 0, %s134
    %s152 = sphi 0, %s152
    %s154 = sphi 0, %s152
    %s155 = sphi 0, %s154
    %s169 = sphi 0, %s155
    %s175 = sphi 0, %s177
    %s178 = sphi 0, %s175
    %s179 = sphi 0, %s178
    %s195 = sphi 0, %s179
  $region4: #{bottleneck_pallas.1} parent=0 // loop_header_branch
    %16 = sbr.rel (%p14) target = $region8
  $region5: #{bottleneck_pallas.1} parent=0 // loop_body
    %s18 = ssub.s32 %s13, 1
    %s19 = ssub.s32 %s13, 2
    %s20 = sadd.s32 %s13, 1
    %s21 = ssub.s32 %s13, %s20
    %p22 = scmp.eq.s32.totalorder %s21, 0
    %s24 = sadd.s32 %s23, 1
    %s25 = scalar_select %p22, %s23, %s24
    %p28 = pneg %p22
    %p29 = scmp.eq.s32.totalorder %s13, 1
    %p30 = por %p28, %p29
    %p31 = scmp.ne.s32.totalorder %s23, %s26
    %p32 = scmp.eq.s32.totalorder %s13, 0
    %p33 = por %p31, %p32
    %p34 = scmp.ne.s32.totalorder %s23, %s26
    %p35 = scmp.eq.s32.totalorder %s18, 1
    %p36 = por %p34, %p35
    %p37 = scmp.ne.s32.totalorder %s26, %s27
    %p38 = scmp.eq.s32.totalorder %s18, 0
    %p39 = por %p37, %p38
    %p40 = scmp.ne.s32.totalorder %s26, %s27
    %p41 = scmp.eq.s32.totalorder %s19, 1
    %p42 = por %p40, %p41
    %p44 = scmp.ne.s32.totalorder %s27, %s43
    %p45 = scmp.eq.s32.totalorder %s19, 0
    %p46 = por %p44, %p45
    %s48 = sadd.s32 %s47, 1
    %p51 = scmp.eq.s32.totalorder %s13, 1
    %p52 = scmp.ne.s32.totalorder %s47, %s49
    %p53 = scmp.eq.s32.totalorder %s13, 0
    %p54 = por %p52, %p53
    %p55 = scmp.ne.s32.totalorder %s47, %s49
    %p56 = scmp.eq.s32.totalorder %s18, 1
    %p57 = por %p55, %p56
    %p58 = scmp.ne.s32.totalorder %s49, %s50
    %p59 = scmp.eq.s32.totalorder %s18, 0
    %p60 = por %p58, %p59
    %p61 = scmp.ne.s32.totalorder %s49, %s50
    %p62 = scmp.eq.s32.totalorder %s19, 1
    %p63 = por %p61, %p62
    %p65 = scmp.ne.s32.totalorder %s50, %s64
    %p66 = scmp.eq.s32.totalorder %s19, 0
    %p67 = por %p65, %p66
    %s69 = sadd.s32 %s68, 1
    %p72 = scmp.eq.s32.totalorder %s13, 1
    %p73 = scmp.ne.s32.totalorder %s68, %s70
    %p74 = scmp.eq.s32.totalorder %s13, 0
    %p75 = por %p73, %p74
    %p76 = scmp.ne.s32.totalorder %s68, %s70
    %p77 = scmp.eq.s32.totalorder %s18, 1
    %p78 = por %p76, %p77
    %p79 = scmp.ne.s32.totalorder %s70, %s71
    %p80 = scmp.eq.s32.totalorder %s18, 0
    %p81 = por %p79, %p80
    %p82 = scmp.ne.s32.totalorder %s70, %s71
    %p83 = scmp.eq.s32.totalorder %s19, 1
    %p84 = por %p82, %p83
    %p86 = scmp.ne.s32.totalorder %s71, %s85
    %p87 = scmp.eq.s32.totalorder %s19, 0
    %p88 = por %p86, %p87
    %s90 = sadd.s32 %s89, 1
    %p93 = scmp.eq.s32.totalorder %s13, 1
    %p94 = scmp.ne.s32.totalorder %s89, %s91
    %p95 = scmp.eq.s32.totalorder %s13, 0
    %p96 = por %p94, %p95
    %p97 = scmp.ne.s32.totalorder %s89, %s91
    %p98 = scmp.eq.s32.totalorder %s18, 1
    %p99 = por %p97, %p98
    %p100 = scmp.ne.s32.totalorder %s91, %s92
    %p101 = scmp.eq.s32.totalorder %s18, 0
    %p102 = por %p100, %p101
    %p103 = scmp.ne.s32.totalorder %s91, %s92
    %p104 = scmp.eq.s32.totalorder %s19, 1
    %p105 = por %p103, %p104
    %p107 = scmp.ne.s32.totalorder %s92, %s106
    %p108 = scmp.eq.s32.totalorder %s19, 0
    %p109 = por %p107, %p108
    %s111 = sadd.s32 %s110, 1
    %p114 = scmp.eq.s32.totalorder %s13, 1
    %p115 = scmp.ne.s32.totalorder %s110, %s112
    %p116 = scmp.eq.s32.totalorder %s13, 0
    %p117 = por %p115, %p116
    %p118 = scmp.ne.s32.totalorder %s110, %s112
    %p119 = scmp.eq.s32.totalorder %s18, 1
    %p120 = por %p118, %p119
    %p121 = scmp.ne.s32.totalorder %s112, %s113
    %p122 = scmp.eq.s32.totalorder %s18, 0
    %p123 = por %p121, %p122
    %p124 = scmp.ne.s32.totalorder %s112, %s113
    %p125 = scmp.eq.s32.totalorder %s19, 1
    %p126 = por %p124, %p125
    %p128 = scmp.ne.s32.totalorder %s113, %s127
    %p129 = scmp.eq.s32.totalorder %s19, 0
    %p130 = por %p128, %p129
    %s132 = sadd.s32 %s131, 1
    %p135 = scmp.eq.s32.totalorder %s13, 1
    %p136 = scmp.ne.s32.totalorder %s131, %s133
    %p137 = scmp.eq.s32.totalorder %s13, 0
    %p138 = por %p136, %p137
    %p139 = scmp.ne.s32.totalorder %s131, %s133
    %p140 = scmp.eq.s32.totalorder %s18, 1
    %p141 = por %p139, %p140
    %p142 = scmp.ne.s32.totalorder %s133, %s134
    %p143 = scmp.eq.s32.totalorder %s18, 0
    %p144 = por %p142, %p143
    %p145 = scmp.ne.s32.totalorder %s133, %s134
    %p146 = scmp.eq.s32.totalorder %s19, 1
    %p147 = por %p145, %p146
    %p149 = scmp.ne.s32.totalorder %s134, %s148
    %p150 = scmp.eq.s32.totalorder %s19, 0
    %p151 = por %p149, %p150
    %s153 = sadd.s32 %s152, 1
    %p156 = scmp.eq.s32.totalorder %s13, 1
    %p157 = scmp.ne.s32.totalorder %s152, %s154
    %p158 = scmp.eq.s32.totalorder %s13, 0
    %p159 = por %p157, %p158
    %p160 = scmp.ne.s32.totalorder %s152, %s154
    %p161 = scmp.eq.s32.totalorder %s18, 1
    %p162 = por %p160, %p161
    %p163 = scmp.ne.s32.totalorder %s154, %s155
    %p164 = scmp.eq.s32.totalorder %s18, 0
    %p165 = por %p163, %p164
    %p166 = scmp.ne.s32.totalorder %s154, %s155
    %p167 = scmp.eq.s32.totalorder %s19, 1
    %p168 = por %p166, %p167
    %p170 = scmp.ne.s32.totalorder %s155, %s169
    %p171 = scmp.eq.s32.totalorder %s19, 0
    %p172 = por %p170, %p171
    %s173 = ssub.s32 %s13, %s20
    %p174 = scmp.eq.s32.totalorder %s173, 0
    %s176 = sadd.s32 %s175, 1
    %s177 = scalar_select %p174, %s175, %s176
    %p180 = pneg %p174
    %p181 = scmp.eq.s32.totalorder %s13, 1
    %p182 = por %p180, %p181
    %p183 = scmp.ne.s32.totalorder %s175, %s178
    %p184 = scmp.eq.s32.totalorder %s13, 0
    %p185 = por %p183, %p184
    %p186 = scmp.ne.s32.totalorder %s175, %s178
    %p187 = scmp.eq.s32.totalorder %s18, 1
    %p188 = por %p186, %p187
    %p189 = scmp.ne.s32.totalorder %s178, %s179
    %p190 = scmp.eq.s32.totalorder %s18, 0
    %p191 = por %p189, %p190
    %p192 = scmp.ne.s32.totalorder %s178, %s179
    %p193 = scmp.eq.s32.totalorder %s19, 1
    %p194 = por %p192, %p193
    %p196 = scmp.ne.s32.totalorder %s179, %s195
    %p197 = scmp.eq.s32.totalorder %s19, 0
    %p198 = por %p196, %p197
    %p199 = scmp.le.s32.totalorder 1, %s13
    %p200 = scmp.lt.s32.totalorder %s13, 3
    %p201 = pnand %p199, %p200
    %p202 = pneg %p201
    // Predicated region
    $region9: #{bottleneck_pallas.1} parent=5 // pred_check
      _
    $region10: #{bottleneck_pallas.1} parent=5 // pred_check_branch
      %204 = sbr.rel (%p201) target = $region12
    $region11: #{bottleneck_pallas.1} parent=5 // pred_region
      %s205 = ssub.s32 %s13, 1
      // Predicated region
      $region13: #{bottleneck_pallas.1} parent=11 // pred_check
        %p206 = pneg %p60
      $region14: #{bottleneck_pallas.1} parent=11 // pred_check_branch
        %208 = sbr.rel (%p206) target = $region16
      $region15: #{bottleneck_pallas.1} parent=11 // pred_region
        _
      $region16: #{bottleneck_pallas.1} parent=11 // pred_fallthru
        _
      // Predicated region
      $region17: #{bottleneck_pallas.1} parent=11 // pred_check
        %p209 = pneg %p81
      $region18: #{bottleneck_pallas.1} parent=11 // pred_check_branch
        %211 = sbr.rel (%p209) target = $region20
      $region19: #{bottleneck_pallas.1} parent=11 // pred_region
        _
      $region20: #{bottleneck_pallas.1} parent=11 // pred_fallthru
        _
      // Predicated region
      $region21: #{bottleneck_pallas.1} parent=11 // pred_check
        %p212 = pneg %p102
      $region22: #{bottleneck_pallas.1} parent=11 // pred_check_branch
        %214 = sbr.rel (%p212) target = $region24
      $region23: #{bottleneck_pallas.1} parent=11 // pred_region
        _
      $region24: #{bottleneck_pallas.1} parent=11 // pred_fallthru
        _
      // Predicated region
      $region25: #{bottleneck_pallas.1} parent=11 // pred_check
        %p215 = pneg %p123
      $region26: #{bottleneck_pallas.1} parent=11 // pred_check_branch
        %217 = sbr.rel (%p215) target = $region28
      $region27: #{bottleneck_pallas.1} parent=11 // pred_region
        _
      $region28: #{bottleneck_pallas.1} parent=11 // pred_fallthru
        _
      // Predicated region
      $region29: #{bottleneck_pallas.1} parent=11 // pred_check
        %p218 = pneg %p144
      $region30: #{bottleneck_pallas.1} parent=11 // pred_check_branch
        %220 = sbr.rel (%p218) target = $region32
      $region31: #{bottleneck_pallas.1} parent=11 // pred_region
        _
      $region32: #{bottleneck_pallas.1} parent=11 // pred_fallthru
        _
      // Predicated region
      $region33: #{bottleneck_pallas.1} parent=11 // pred_check
        %p221 = pneg %p165
      $region34: #{bottleneck_pallas.1} parent=11 // pred_check_branch
        %223 = sbr.rel (%p221) target = $region36
      $region35: #{bottleneck_pallas.1} parent=11 // pred_region
        _
      $region36: #{bottleneck_pallas.1} parent=11 // pred_fallthru
        _
    $region12: #{bottleneck_pallas.1} parent=5 // pred_fallthru
      _
    %p224 = scmp.lt.s32.totalorder %s13, 2
    // Predicated region
    $region37: #{bottleneck_pallas.1} parent=5 // pred_check
      %p225 = pneg %p224
    $region38: #{bottleneck_pallas.1} parent=5 // pred_check_branch
      %227 = sbr.rel (%p225) target = $region40
    $region39: #{bottleneck_pallas.1} parent=5 // pred_region
      // Predicated region
      $region41: #{bottleneck_pallas.1} parent=39 // pred_check
        %p228 = pneg %p33
      $region42: #{bottleneck_pallas.1} parent=39 // pred_check_branch
        %230 = sbr.rel (%p228) target = $region44
      $region43: #{bottleneck_pallas.1} parent=39 // pred_region
        %s231 = smul.u32 2, %s13
        %p232 = scmp.lt.s32.totalorder %s231, 3
        %s233 = scalar_select %p232, %s231, 3
        %s234 = smul.addr %s233, 2
        %s235 = smul.addr %s234, 4
        %s236 = scalar_lea.vmem %s0, %s235
        %s237 = smul.u32 2, %s13
      $region44: #{bottleneck_pallas.1} parent=39 // pred_fallthru
        _
    $region40: #{bottleneck_pallas.1} parent=5 // pred_fallthru
      _
    %p238 = scmp.le.s32.totalorder 1, %s13
    %p239 = scmp.lt.s32.totalorder %s13, 3
    %p240 = pnand %p238, %p239
    %p241 = pneg %p240
    // Predicated region
    $region45: #{bottleneck_pallas.1} parent=5 // pred_check
      _
    $region46: #{bottleneck_pallas.1} parent=5 // pred_check_branch
      %243 = sbr.rel (%p240) target = $region48
    $region47: #{bottleneck_pallas.1} parent=5 // pred_region
      %s244 = ssub.s32 %s13, 1
      %s245 = smul.u32 2, %s18
      %p246 = scmp.lt.s32.totalorder %s245, 3
      %s247 = scalar_select %p246, %s245, 3
      %s248 = smul.addr %s247, 2
      %s249 = smul.addr %s248, 4
      %s250 = scalar_lea.vmem %s0, %s249
      %p251 = pneg %p39
      %p252 = pneg %p36
      %p253 = pneg %p60
      %p254 = pneg %p57
      %p255 = pneg %p81
      %p256 = pneg %p78
      %p257 = pneg %p102
      %p258 = pneg %p99
      %p259 = pneg %p123
      %p260 = pneg %p120
      %p261 = pneg %p144
      %p262 = pneg %p141
      %p263 = pneg %p165
      %p264 = pneg %p162
      %p265 = pneg %p191
      %p266 = pneg %p188
      %s267 = smul.u32 2, %s18
      %p268 = scmp.lt.s32.totalorder %s267, 3
      %s269 = scalar_select %p268, %s267, 3
      %s270 = smul.addr %s269, 2
      %s271 = smul.addr %s270, 4
      %s272 = scalar_lea.vmem %s7, %s271
      %s273 = smul.u32 2, %s18
      %p274 = scmp.lt.s32.totalorder %s273, 3
      %s275 = scalar_select %p274, %s273, 3
      %s276 = smul.addr %s275, 2
      %s277 = smul.addr %s276, 4
      %s278 = scalar_lea.vmem %s0, %s277
      %s279 = smul.u32 2, %s18
      %s280 = smul.u32 2, %s18
      %p281 = scmp.lt.s32.totalorder %s280, 3
      %s282 = scalar_select %p281, %s280, 3
      %s283 = smul.addr %s282, 2
      %s284 = smul.addr %s283, 4
      %s285 = scalar_lea.vmem %s7, %s284
      %s286 = smul.u32 2, %s18
      %v287 = vld [vmem:[%s4] sm:$0xff]
      %v288 = vld [vmem:[%s4 + $0x8] sm:$0xff]
      %v289 = vld [vmem:[%s5] sm:$0xf]
      %v290 = vld [vmem:[%s1] sm:$0xff]
      %v291 = vld [vmem:[%s1 + $0x8] sm:$0xff]
      %v292 = vld [vmem:[%s2] sm:$0xff]
      %v293 = vld [vmem:[%s2 + $0x8] sm:$0xff]
      %v294 = vld [vmem:[%s3] sm:$0xf]
      %295 = vst [vmem:[#allocation2] sm:$0xff] 0.0
      %296 = vst [vmem:[#allocation2 + $0x20] sm:$0xff] 0.0
      %297 = vst [vmem:[#allocation2 + $0x40] sm:$0xff] 0.0
      %298 = vst [vmem:[#allocation2 + $0x60] sm:$0xff] 0.0
      %299 = vst [vmem:[#allocation2 + $0x18] sm:$0xff] 0.0
      %300 = vst [vmem:[#allocation2 + $0x38] sm:$0xff] 0.0
      %301 = vst [vmem:[#allocation2 + $0x58] sm:$0xff] 0.0
      %302 = vst [vmem:[#allocation2 + $0x78] sm:$0xff] 0.0
      %v303 = vld [vmem:[%s278] sm:$0xff]
      %305 = vset.pattern.permute.xlu0 0
      %306 = vperm.xlu0 %305, %v287
      %v307 = vpop.permute.xlu0 %306
      %310 = vset.pattern.permute.xlu0 0
      %311 = vperm.xlu0 %310, %v288
      %v312 = vpop.permute.xlu0 %311
      %v315 = vcombine.high %v303, %v303
      %vm316 = vcmask 31744
      %v318 = vsel %vm316, %v290, 0
      %v321 = vsel %vm316, %v291, 0
      %vm323 = vcmask 1043456
      %v324 = vsel %vm323, %v303, 0
      %v326 = vsel %vm323, %v315, 0
      %328 = vmatprep.subr.mxu0 0.0
      %329 = vmatpush1.msra.mxu0 0.0
      %330 = vmatprep.subr.mxu0 0.0
      %331 = vmatpush1.msra.mxu0 0.0
      %332 = vmatprep.subr.mxu0 0.0
      %333 = vmatpush1.msra.mxu0 0.0
      %334 = vmatprep.subr.mxu0 0.0
      %335 = vmatpush1.msra.mxu0 0.0
      %336 = vmatprep.subr.mxu0 0.0
      %337 = vmatpush1.msra.mxu0 0.0
      %338 = vmatprep.subr.mxu0 0.0
      %339 = vmatpush1.msra.mxu0 0.0
      %340 = vmatprep.subr.mxu0 0.0
      %341 = vmatpush1.msra.mxu0 0.0
      %342 = vmatprep.subr.mxu0 0.0
      %343 = vmatpush1.msra.mxu0 0.0
      %344 = vmatprep.subr.mxu0 0.0
      %345 = vmatpush1.msra.mxu0 0.0
      %346 = vmatprep.subr.mxu0 0.0
      %347 = vmatpush1.msra.mxu0 0.0
      %348 = vmatprep.subr.mxu0 0.0
      %349 = vmatpush1.msra.mxu0 0.0
      %350 = vmatprep.subr.mxu0 0.0
      %351 = vmatpush1.msra.mxu0 0.0
      %352 = vmatprep.subr.mxu0 0.0
      %353 = vmatpush1.msra.mxu0 0.0
      %354 = vmatprep.subr.mxu0 0.0
      %355 = vmatpush1.msra.mxu0 0.0
      %356 = vmatprep.subr.mxu0 0.0
      %357 = vmatpush1.msra.mxu0 0.0
      %358 = vmatprep.subr.mxu0 %v326
      %359 = vmatpush1.msra.mxu0 %v324
      %360 = vmatprep.subr.mxu0 0.0
      %361 = vmatpush2.msra.mxu0 0.0
      %362 = vmatprep.subr.mxu0 0.0
      %363 = vmatpush2.msra.mxu0 0.0
      %364 = vmatprep.subr.mxu0 0.0
      %365 = vmatpush2.msra.mxu0 0.0
      %366 = vmatprep.subr.mxu0 0.0
      %367 = vmatpush2.msra.mxu0 0.0
      %368 = vmatprep.subr.mxu0 0.0
      %369 = vmatpush2.msra.mxu0 0.0
      %370 = vmatprep.subr.mxu0 0.0
      %371 = vmatpush2.msra.mxu0 0.0
      %372 = vmatprep.subr.mxu0 0.0
      %373 = vmatpush2.msra.mxu0 0.0
      %374 = vmatprep.subr.mxu0 0.0
      %375 = vmatpush2.msra.mxu0 0.0
      %376 = vmatprep.subr.mxu0 0.0
      %377 = vmatpush2.msra.mxu0 0.0
      %378 = vmatprep.subr.mxu0 0.0
      %379 = vmatpush2.msra.mxu0 0.0
      %380 = vmatprep.subr.mxu0 0.0
      %381 = vmatpush2.msra.mxu0 0.0
      %382 = vmatprep.subr.mxu0 0.0
      %383 = vmatpush2.msra.mxu0 0.0
      %384 = vmatprep.subr.mxu0 0.0
      %385 = vmatpush2.msra.mxu0 0.0
      %386 = vmatprep.subr.mxu0 0.0
      %387 = vmatpush2.msra.mxu0 0.0
      %388 = vmatprep.subr.mxu0 0.0
      %389 = vmatpush2.msra.mxu0 0.0
      %390 = vmatprep.subr.mxu0 0.0
      %391 = vmatpush2.msra.mxu0 0.0
      %392 = vmatprep.mubr.f32.mxu0 0.0
      %393 = vmatmul.mubr.f32.gmra.mxu0 %v318
      %v394 = vpop.f32.mrf.mxu0
      %v395 = vadd.f32 %v307, %v394
      %v396 = vpop.f32.mrf.mxu0
      %v397 = vadd.f32 %v307, %v396
      %398 = vmatprep.mubr.f32.mxu0 0.0
      %399 = vmatmul.mubr.f32.gmra.mxu0 %v321
      %v400 = vpop.f32.mrf.mxu0
      %v401 = vadd.f32 %v312, %v400
      %v402 = vpop.f32.mrf.mxu0
      %v403 = vadd.f32 %v312, %v402
      %404 = vdwg.mxu0
      %vm405 = vcmp.ge.f32.partialorder %v395, 0.0
      %vm406 = vcmp.ge.f32.partialorder %v397, 0.0
      %vm407 = vcmp.ge.f32.partialorder %v401, 0.0
      %vm408 = vcmp.ge.f32.partialorder %v403, 0.0
      %409 = vset.pattern.permute.xlu0 1
      %410 = vperm.xlu0 %409, %v287
      %v411 = vpop.permute.xlu0 %410
      %413 = vset.pattern.permute.xlu0 1
      %414 = vperm.xlu0 %413, %v288
      %v415 = vpop.permute.xlu0 %414
      %v417 = vmul.f32 %v411, %v395
      %v418 = vmul.f32 %v411, %v397
      %v419 = vmul.f32 %v415, %v401
      %v420 = vmul.f32 %v415, %v403
      %v421 = vsel %vm405, %v395, %v417
      %v422 = vsel %vm406, %v397, %v418
      %v423 = vsel %vm407, %v401, %v419
      %v424 = vsel %vm408, %v403, %v420
      %425 = vst [vmem:[#allocation2 + $0x8] sm:$0xff] %v421
      %426 = vst [vmem:[#allocation2 + $0x10] sm:$0xff] %v422
      %427 = vst [vmem:[#allocation2 + $0x28] sm:$0xff] %v423
      %428 = vst [vmem:[#allocation2 + $0x30] sm:$0xff] %v424
      %s429 = scalar_lea.vmem %s278, 8
      %v430 = vld [vmem:[%s429] sm:$0xff]
      %v432 = vcombine.high %v430, %v430
      %v433 = vsel %vm323, %v430, 0
      %v435 = vsel %vm323, %v432, 0
      %437 = vmatprep.subr.mxu0 0.0
      %438 = vmatpush1.msra.mxu0 0.0
      %439 = vmatprep.subr.mxu0 0.0
      %440 = vmatpush1.msra.mxu0 0.0
      %441 = vmatprep.subr.mxu0 0.0
      %442 = vmatpush1.msra.mxu0 0.0
      %443 = vmatprep.subr.mxu0 0.0
      %444 = vmatpush1.msra.mxu0 0.0
      %445 = vmatprep.subr.mxu0 0.0
      %446 = vmatpush1.msra.mxu0 0.0
      %447 = vmatprep.subr.mxu0 0.0
      %448 = vmatpush1.msra.mxu0 0.0
      %449 = vmatprep.subr.mxu0 0.0
      %450 = vmatpush1.msra.mxu0 0.0
      %451 = vmatprep.subr.mxu0 0.0
      %452 = vmatpush1.msra.mxu0 0.0
      %453 = vmatprep.subr.mxu0 0.0
      %454 = vmatpush1.msra.mxu0 0.0
      %455 = vmatprep.subr.mxu0 0.0
      %456 = vmatpush1.msra.mxu0 0.0
      %457 = vmatprep.subr.mxu0 0.0
      %458 = vmatpush1.msra.mxu0 0.0
      %459 = vmatprep.subr.mxu0 0.0
      %460 = vmatpush1.msra.mxu0 0.0
      %461 = vmatprep.subr.mxu0 0.0
      %462 = vmatpush1.msra.mxu0 0.0
      %463 = vmatprep.subr.mxu0 0.0
      %464 = vmatpush1.msra.mxu0 0.0
      %465 = vmatprep.subr.mxu0 0.0
      %466 = vmatpush1.msra.mxu0 0.0
      %467 = vmatprep.subr.mxu0 %v435
      %468 = vmatpush1.msra.mxu0 %v433
      %469 = vmatprep.subr.mxu0 0.0
      %470 = vmatpush2.msra.mxu0 0.0
      %471 = vmatprep.subr.mxu0 0.0
      %472 = vmatpush2.msra.mxu0 0.0
      %473 = vmatprep.subr.mxu0 0.0
      %474 = vmatpush2.msra.mxu0 0.0
      %475 = vmatprep.subr.mxu0 0.0
      %476 = vmatpush2.msra.mxu0 0.0
      %477 = vmatprep.subr.mxu0 0.0
      %478 = vmatpush2.msra.mxu0 0.0
      %479 = vmatprep.subr.mxu0 0.0
      %480 = vmatpush2.msra.mxu0 0.0
      %481 = vmatprep.subr.mxu0 0.0
      %482 = vmatpush2.msra.mxu0 0.0
      %483 = vmatprep.subr.mxu0 0.0
      %484 = vmatpush2.msra.mxu0 0.0
      %485 = vmatprep.subr.mxu0 0.0
      %486 = vmatpush2.msra.mxu0 0.0
      %487 = vmatprep.subr.mxu0 0.0
      %488 = vmatpush2.msra.mxu0 0.0
      %489 = vmatprep.subr.mxu0 0.0
      %490 = vmatpush2.msra.mxu0 0.0
      %491 = vmatprep.subr.mxu0 0.0
      %492 = vmatpush2.msra.mxu0 0.0
      %493 = vmatprep.subr.mxu0 0.0
      %494 = vmatpush2.msra.mxu0 0.0
      %495 = vmatprep.subr.mxu0 0.0
      %496 = vmatpush2.msra.mxu0 0.0
      %497 = vmatprep.subr.mxu0 0.0
      %498 = vmatpush2.msra.mxu0 0.0
      %499 = vmatprep.subr.mxu0 0.0
      %500 = vmatpush2.msra.mxu0 0.0
      %501 = vmatprep.mubr.f32.mxu0 0.0
      %502 = vmatmul.mubr.f32.gmra.mxu0 %v318
      %v503 = vpop.f32.mrf.mxu0
      %v504 = vadd.f32 %v307, %v503
      %v505 = vpop.f32.mrf.mxu0
      %v506 = vadd.f32 %v307, %v505
      %507 = vmatprep.mubr.f32.mxu0 0.0
      %508 = vmatmul.mubr.f32.gmra.mxu0 %v321
      %v509 = vpop.f32.mrf.mxu0
      %v510 = vadd.f32 %v312, %v509
      %v511 = vpop.f32.mrf.mxu0
      %v512 = vadd.f32 %v312, %v511
      %513 = vdwg.mxu0
      %vm514 = vcmp.ge.f32.partialorder %v504, 0.0
      %vm515 = vcmp.ge.f32.partialorder %v506, 0.0
      %vm516 = vcmp.ge.f32.partialorder %v510, 0.0
      %vm517 = vcmp.ge.f32.partialorder %v512, 0.0
      %v518 = vmul.f32 %v411, %v504
      %v519 = vmul.f32 %v411, %v506
      %v520 = vmul.f32 %v415, %v510
      %v521 = vmul.f32 %v415, %v512
      %v522 = vsel %vm514, %v504, %v518
      %v523 = vsel %vm515, %v506, %v519
      %v524 = vsel %vm516, %v510, %v520
      %v525 = vsel %vm517, %v512, %v521
      %s526 = scalar_lea.vmem [#allocation2], 64
      %527 = vst [vmem:[%s526 + $0x8] sm:$0xff] %v522
      %528 = vst [vmem:[%s526 + $0x10] sm:$0xff] %v523
      %529 = vst [vmem:[%s526 + $0x28] sm:$0xff] %v524
      %530 = vst [vmem:[%s526 + $0x30] sm:$0xff] %v525
      %v531 = vld [vmem:[%s6] ss:$2 sm:$0x3]
      %s532 = scalar_lea.vmem %s6, 1
      %v533 = vld [vmem:[%s532] ss:$2 sm:$0x3]
      %v534 = vld [vmem:[#allocation2] sm:$0xff]
      %v535 = vld [vmem:[#allocation2 + $0x8] sm:$0xff]
      %v536 = vld [vmem:[#allocation2 + $0x10] sm:$0xff]
      %v537 = vld [vmem:[#allocation2 + $0x20] sm:$0xff]
      %v538 = vld [vmem:[#allocation2 + $0x28] sm:$0xff]
      %v539 = vld [vmem:[#allocation2 + $0x30] sm:$0xff]
      %v540 = vld [vmem:[#allocation2 + $0x40] sm:$0xff]
      %v541 = vld [vmem:[#allocation2 + $0x48] sm:$0xff]
      %v542 = vld [vmem:[#allocation2 + $0x50] sm:$0xff]
      %v543 = vld [vmem:[#allocation2 + $0x60] sm:$0xff]
      %v544 = vld [vmem:[#allocation2 + $0x68] sm:$0xff]
      %v545 = vld [vmem:[#allocation2 + $0x70] sm:$0xff]
      %547 = vset.pattern.permute.xlu0 0
      %548 = vperm.xlu0 %547, %v292
      %v549 = vpop.permute.xlu0 %548
      %552 = vset.pattern.permute.xlu0 0
      %553 = vperm.xlu0 %552, %v293
      %v554 = vpop.permute.xlu0 %553
      %v556 = vmul.f32 %v534, %v549
      %v557 = vmul.f32 %v535, %v549
      %v558 = vmul.f32 %v536, %v549
      %v559 = vmul.f32 %v537, %v554
      %v560 = vmul.f32 %v538, %v554
      %v561 = vmul.f32 %v539, %v554
      %v562 = vmul.f32 %v540, %v549
      %v563 = vmul.f32 %v541, %v549
      %v564 = vmul.f32 %v542, %v549
      %v565 = vmul.f32 %v543, %v554
      %v566 = vmul.f32 %v544, %v554
      %v567 = vmul.f32 %v545, %v554
      %568 = vset.pattern.permute.xlu0 3
      %569 = vperm.xlu0 %568, %v292
      %v570 = vpop.permute.xlu0 %569
      %572 = vset.pattern.permute.xlu0 3
      %573 = vperm.xlu0 %572, %v293
      %v574 = vpop.permute.xlu0 %573
      %v576 = vmul.f32 %v534, %v570
      %v577 = vmul.f32 %v535, %v570
      %v578 = vmul.f32 %v536, %v570
      %v579 = vmul.f32 %v537, %v574
      %v580 = vmul.f32 %v538, %v574
      %v581 = vmul.f32 %v539, %v574
      %v582 = vmul.f32 %v540, %v570
      %v583 = vmul.f32 %v541, %v570
      %v584 = vmul.f32 %v542, %v570
      %v585 = vmul.f32 %v543, %v574
      %v586 = vmul.f32 %v544, %v574
      %v587 = vmul.f32 %v545, %v574
      %600 = vrot.lane.b32.xlu0 %v576, 112
      %v601 = vpop.permute.xlu0 %600
      %602 = vrot.lane.b32.xlu0 %v577, 112
      %v603 = vpop.permute.xlu0 %602
      %604 = vrot.lane.b32.xlu0 %v578, 112
      %v605 = vpop.permute.xlu0 %604
      %606 = vrot.lane.b32.xlu0 %v579, 112
      %v607 = vpop.permute.xlu0 %606
      %608 = vrot.lane.b32.xlu0 %v580, 112
      %v609 = vpop.permute.xlu0 %608
      %610 = vrot.lane.b32.xlu0 %v581, 112
      %v611 = vpop.permute.xlu0 %610
      %612 = vrot.lane.b32.xlu0 %v582, 112
      %v613 = vpop.permute.xlu0 %612
      %614 = vrot.lane.b32.xlu0 %v583, 112
      %v615 = vpop.permute.xlu0 %614
      %616 = vrot.lane.b32.xlu0 %v584, 112
      %v617 = vpop.permute.xlu0 %616
      %618 = vrot.lane.b32.xlu0 %v585, 112
      %v619 = vpop.permute.xlu0 %618
      %620 = vrot.lane.b32.xlu0 %v586, 112
      %v621 = vpop.permute.xlu0 %620
      %622 = vrot.lane.b32.xlu0 %v587, 112
      %v623 = vpop.permute.xlu0 %622
      %vm624 = vcmask 916480
      %v625 = vsel %vm624, %v601, %v603
      %v626 = vsel %vm624, %v603, %v605
      %v627 = vsel %vm624, %v607, %v609
      %v628 = vsel %vm624, %v609, %v611
      %v629 = vsel %vm624, %v613, %v615
      %v630 = vsel %vm624, %v615, %v617
      %v631 = vsel %vm624, %v619, %v621
      %v632 = vsel %vm624, %v621, %v623
      %v645 = vadd.f32 %v556, %v625
      %v646 = vadd.f32 %v557, %v626
      %v647 = vadd.f32 %v558, %v605
      %v648 = vadd.f32 %v559, %v627
      %v649 = vadd.f32 %v560, %v628
      %v650 = vadd.f32 %v561, %v611
      %v651 = vadd.f32 %v562, %v629
      %v652 = vadd.f32 %v563, %v630
      %v653 = vadd.f32 %v564, %v617
      %v654 = vadd.f32 %v565, %v631
      %v655 = vadd.f32 %v566, %v632
      %v656 = vadd.f32 %v567, %v623
      %v657 = vld [vmem:[#allocation2 + $0x8] sm:$0xff]
      %v658 = vld [vmem:[#allocation2 + $0x10] sm:$0xff]
      %v659 = vld [vmem:[#allocation2 + $0x18] sm:$0xff]
      %v660 = vld [vmem:[#allocation2 + $0x28] sm:$0xff]
      %v661 = vld [vmem:[#allocation2 + $0x30] sm:$0xff]
      %v662 = vld [vmem:[#allocation2 + $0x38] sm:$0xff]
      %v663 = vld [vmem:[#allocation2 + $0x48] sm:$0xff]
      %v664 = vld [vmem:[#allocation2 + $0x50] sm:$0xff]
      %v665 = vld [vmem:[#allocation2 + $0x58] sm:$0xff]
      %v666 = vld [vmem:[#allocation2 + $0x68] sm:$0xff]
      %v667 = vld [vmem:[#allocation2 + $0x70] sm:$0xff]
      %v668 = vld [vmem:[#allocation2 + $0x78] sm:$0xff]
      %669 = vset.pattern.permute.xlu0 6
      %670 = vperm.xlu0 %669, %v292
      %v671 = vpop.permute.xlu0 %670
      %673 = vset.pattern.permute.xlu0 6
      %674 = vperm.xlu0 %673, %v293
      %v675 = vpop.permute.xlu0 %674
      %v677 = vmul.f32 %v657, %v671
      %v678 = vmul.f32 %v658, %v671
      %v679 = vmul.f32 %v659, %v671
      %v680 = vmul.f32 %v660, %v675
      %v681 = vmul.f32 %v661, %v675
      %v682 = vmul.f32 %v662, %v675
      %v683 = vmul.f32 %v663, %v671
      %v684 = vmul.f32 %v664, %v671
      %v685 = vmul.f32 %v665, %v671
      %v686 = vmul.f32 %v666, %v675
      %v687 = vmul.f32 %v667, %v675
      %v688 = vmul.f32 %v668, %v675
      %701 = vrot.lane.b32.xlu0 %v677, 96
      %v702 = vpop.permute.xlu0 %701
      %703 = vrot.lane.b32.xlu0 %v678, 96
      %v704 = vpop.permute.xlu0 %703
      %705 = vrot.lane.b32.xlu0 %v679, 96
      %v706 = vpop.permute.xlu0 %705
      %707 = vrot.lane.b32.xlu0 %v680, 96
      %v708 = vpop.permute.xlu0 %707
      %709 = vrot.lane.b32.xlu0 %v681, 96
      %v710 = vpop.permute.xlu0 %709
      %711 = vrot.lane.b32.xlu0 %v682, 96
      %v712 = vpop.permute.xlu0 %711
      %713 = vrot.lane.b32.xlu0 %v683, 96
      %v714 = vpop.permute.xlu0 %713
      %715 = vrot.lane.b32.xlu0 %v684, 96
      %v716 = vpop.permute.xlu0 %715
      %717 = vrot.lane.b32.xlu0 %v685, 96
      %v718 = vpop.permute.xlu0 %717
      %719 = vrot.lane.b32.xlu0 %v686, 96
      %v720 = vpop.permute.xlu0 %719
      %721 = vrot.lane.b32.xlu0 %v687, 96
      %v722 = vpop.permute.xlu0 %721
      %723 = vrot.lane.b32.xlu0 %v688, 96
      %v724 = vpop.permute.xlu0 %723
      %vm725 = vcmask 785408
      %v726 = vsel %vm725, %v702, %v704
      %v727 = vsel %vm725, %v704, %v706
      %v728 = vsel %vm725, %v708, %v710
      %v729 = vsel %vm725, %v710, %v712
      %v730 = vsel %vm725, %v714, %v716
      %v731 = vsel %vm725, %v716, %v718
      %v732 = vsel %vm725, %v720, %v722
      %v733 = vsel %vm725, %v722, %v724
      %v746 = vadd.f32 %v645, %v702
      %v747 = vadd.f32 %v646, %v726
      %v748 = vadd.f32 %v647, %v727
      %v749 = vadd.f32 %v648, %v708
      %v750 = vadd.f32 %v649, %v728
      %v751 = vadd.f32 %v650, %v729
      %v752 = vadd.f32 %v651, %v714
      %v753 = vadd.f32 %v652, %v730
      %v754 = vadd.f32 %v653, %v731
      %v755 = vadd.f32 %v654, %v720
      %v756 = vadd.f32 %v655, %v732
      %v757 = vadd.f32 %v656, %v733
      %v759 = vlaneseq
      %v760 = vshrl.u32 %v759, 7
      %v761 = vsub.s32 0, %v760
      %v762 = vrot.slane %v531, %v761
      %v763 = vlaneseq
      %v764 = vshrl.u32 %v763, 7
      %v765 = vsub.s32 1, %v764
      %v766 = vrot.slane %v531, %v765
      %767 = vrot.lane.b32.xlu0 %v762, 111
      %v768 = vpop.permute.xlu0 %767
      %769 = vrot.lane.b32.xlu0 %v766, 111
      %v770 = vpop.permute.xlu0 %769
      %vm771 = vcmask 908288
      %v772 = vsel %vm771, %v768, %v770
      %v776 = vmul.f32 %v746, %v768
      %v777 = vmul.f32 %v747, %v772
      %v778 = vmul.f32 %v748, %v770
      %v779 = vmul.f32 %v749, %v768
      %v780 = vmul.f32 %v750, %v772
      %v781 = vmul.f32 %v751, %v770
      %v782 = vmul.f32 %v752, %v768
      %v783 = vmul.f32 %v753, %v772
      %v784 = vmul.f32 %v754, %v770
      %v785 = vmul.f32 %v755, %v768
      %v786 = vmul.f32 %v756, %v772
      %v787 = vmul.f32 %v757, %v770
      %788 = vset.pattern.permute.xlu0 1
      %789 = vperm.xlu0 %788, %v292
      %v790 = vpop.permute.xlu0 %789
      %792 = vset.pattern.permute.xlu0 1
      %793 = vperm.xlu0 %792, %v293
      %v794 = vpop.permute.xlu0 %793
      %v796 = vmul.f32 %v534, %v790
      %v797 = vmul.f32 %v535, %v790
      %v798 = vmul.f32 %v536, %v790
      %v799 = vmul.f32 %v537, %v794
      %v800 = vmul.f32 %v538, %v794
      %v801 = vmul.f32 %v539, %v794
      %v802 = vmul.f32 %v540, %v790
      %v803 = vmul.f32 %v541, %v790
      %v804 = vmul.f32 %v542, %v790
      %v805 = vmul.f32 %v543, %v794
      %v806 = vmul.f32 %v544, %v794
      %v807 = vmul.f32 %v545, %v794
      %808 = vset.pattern.permute.xlu0 4
      %809 = vperm.xlu0 %808, %v292
      %v810 = vpop.permute.xlu0 %809
      %812 = vset.pattern.permute.xlu0 4
      %813 = vperm.xlu0 %812, %v293
      %v814 = vpop.permute.xlu0 %813
      %v816 = vmul.f32 %v535, %v810
      %v817 = vmul.f32 %v536, %v810
      %v818 = vmul.f32 %v538, %v814
      %v819 = vmul.f32 %v539, %v814
      %v820 = vmul.f32 %v541, %v810
      %v821 = vmul.f32 %v542, %v810
      %v822 = vmul.f32 %v544, %v814
      %v823 = vmul.f32 %v545, %v814
      %832 = vrot.lane.b32.xlu0 %v816, 112
      %v833 = vpop.permute.xlu0 %832
      %834 = vrot.lane.b32.xlu0 %v817, 112
      %v835 = vpop.permute.xlu0 %834
      %836 = vrot.lane.b32.xlu0 %v818, 112
      %v837 = vpop.permute.xlu0 %836
      %838 = vrot.lane.b32.xlu0 %v819, 112
      %v839 = vpop.permute.xlu0 %838
      %840 = vrot.lane.b32.xlu0 %v820, 112
      %v841 = vpop.permute.xlu0 %840
      %842 = vrot.lane.b32.xlu0 %v821, 112
      %v843 = vpop.permute.xlu0 %842
      %844 = vrot.lane.b32.xlu0 %v822, 112
      %v845 = vpop.permute.xlu0 %844
      %846 = vrot.lane.b32.xlu0 %v823, 112
      %v847 = vpop.permute.xlu0 %846
      %v848 = vsel %vm624, %v833, %v835
      %v849 = vsel %vm624, %v837, %v839
      %v850 = vsel %vm624, %v841, %v843
      %v851 = vsel %vm624, %v845, %v847
      %v864 = vadd.f32 %v796, %v833
      %v865 = vadd.f32 %v797, %v848
      %v866 = vadd.f32 %v798, %v835
      %v867 = vadd.f32 %v799, %v837
      %v868 = vadd.f32 %v800, %v849
      %v869 = vadd.f32 %v801, %v839
      %v870 = vadd.f32 %v802, %v841
      %v871 = vadd.f32 %v803, %v850
      %v872 = vadd.f32 %v804, %v843
      %v873 = vadd.f32 %v805, %v845
      %v874 = vadd.f32 %v806, %v851
      %v875 = vadd.f32 %v807, %v847
      %876 = vset.pattern.permute.xlu0 7
      %877 = vperm.xlu0 %876, %v292
      %v878 = vpop.permute.xlu0 %877
      %880 = vset.pattern.permute.xlu0 7
      %881 = vperm.xlu0 %880, %v293
      %v882 = vpop.permute.xlu0 %881
      %v884 = vmul.f32 %v657, %v878
      %v885 = vmul.f32 %v658, %v878
      %v886 = vmul.f32 %v659, %v878
      %v887 = vmul.f32 %v660, %v882
      %v888 = vmul.f32 %v661, %v882
      %v889 = vmul.f32 %v662, %v882
      %v890 = vmul.f32 %v663, %v878
      %v891 = vmul.f32 %v664, %v878
      %v892 = vmul.f32 %v665, %v878
      %v893 = vmul.f32 %v666, %v882
      %v894 = vmul.f32 %v667, %v882
      %v895 = vmul.f32 %v668, %v882
      %908 = vrot.lane.b32.xlu0 %v884, 96
      %v909 = vpop.permute.xlu0 %908
      %910 = vrot.lane.b32.xlu0 %v885, 96
      %v911 = vpop.permute.xlu0 %910
      %912 = vrot.lane.b32.xlu0 %v886, 96
      %v913 = vpop.permute.xlu0 %912
      %914 = vrot.lane.b32.xlu0 %v887, 96
      %v915 = vpop.permute.xlu0 %914
      %916 = vrot.lane.b32.xlu0 %v888, 96
      %v917 = vpop.permute.xlu0 %916
      %918 = vrot.lane.b32.xlu0 %v889, 96
      %v919 = vpop.permute.xlu0 %918
      %920 = vrot.lane.b32.xlu0 %v890, 96
      %v921 = vpop.permute.xlu0 %920
      %922 = vrot.lane.b32.xlu0 %v891, 96
      %v923 = vpop.permute.xlu0 %922
      %924 = vrot.lane.b32.xlu0 %v892, 96
      %v925 = vpop.permute.xlu0 %924
      %926 = vrot.lane.b32.xlu0 %v893, 96
      %v927 = vpop.permute.xlu0 %926
      %928 = vrot.lane.b32.xlu0 %v894, 96
      %v929 = vpop.permute.xlu0 %928
      %930 = vrot.lane.b32.xlu0 %v895, 96
      %v931 = vpop.permute.xlu0 %930
      %v932 = vsel %vm725, %v909, %v911
      %v933 = vsel %vm725, %v911, %v913
      %v934 = vsel %vm725, %v915, %v917
      %v935 = vsel %vm725, %v917, %v919
      %v936 = vsel %vm725, %v921, %v923
      %v937 = vsel %vm725, %v923, %v925
      %v938 = vsel %vm725, %v927, %v929
      %v939 = vsel %vm725, %v929, %v931
      %v952 = vadd.f32 %v864, %v909
      %v953 = vadd.f32 %v865, %v932
      %v954 = vadd.f32 %v866, %v933
      %v955 = vadd.f32 %v867, %v915
      %v956 = vadd.f32 %v868, %v934
      %v957 = vadd.f32 %v869, %v935
      %v958 = vadd.f32 %v870, %v921
      %v959 = vadd.f32 %v871, %v936
      %v960 = vadd.f32 %v872, %v937
      %v961 = vadd.f32 %v873, %v927
      %v962 = vadd.f32 %v874, %v938
      %v963 = vadd.f32 %v875, %v939
      %976 = vrot.lane.b32.xlu0 %v952, 127
      %v977 = vpop.permute.xlu0 %976
      %978 = vrot.lane.b32.xlu0 %v953, 127
      %v979 = vpop.permute.xlu0 %978
      %980 = vrot.lane.b32.xlu0 %v954, 127
      %v981 = vpop.permute.xlu0 %980
      %982 = vrot.lane.b32.xlu0 %v955, 127
      %v983 = vpop.permute.xlu0 %982
      %984 = vrot.lane.b32.xlu0 %v956, 127
      %v985 = vpop.permute.xlu0 %984
      %986 = vrot.lane.b32.xlu0 %v957, 127
      %v987 = vpop.permute.xlu0 %986
      %988 = vrot.lane.b32.xlu0 %v958, 127
      %v989 = vpop.permute.xlu0 %988
      %990 = vrot.lane.b32.xlu0 %v959, 127
      %v991 = vpop.permute.xlu0 %990
      %992 = vrot.lane.b32.xlu0 %v960, 127
      %v993 = vpop.permute.xlu0 %992
      %994 = vrot.lane.b32.xlu0 %v961, 127
      %v995 = vpop.permute.xlu0 %994
      %996 = vrot.lane.b32.xlu0 %v962, 127
      %v997 = vpop.permute.xlu0 %996
      %998 = vrot.lane.b32.xlu0 %v963, 127
      %v999 = vpop.permute.xlu0 %998
      %vm1000 = vcmask 1039360
      %v1001 = vsel %vm1000, %v977, %v979
      %v1002 = vsel %vm1000, %v979, %v981
      %v1003 = vsel %vm1000, %v983, %v985
      %v1004 = vsel %vm1000, %v985, %v987
      %v1005 = vsel %vm1000, %v989, %v991
      %v1006 = vsel %vm1000, %v991, %v993
      %v1007 = vsel %vm1000, %v995, %v997
      %v1008 = vsel %vm1000, %v997, %v999
      %v1021 = vadd.f32 %v776, %v1001
      %v1022 = vadd.f32 %v777, %v1002
      %v1023 = vadd.f32 %v778, %v981
      %v1024 = vadd.f32 %v779, %v1003
      %v1025 = vadd.f32 %v780, %v1004
      %v1026 = vadd.f32 %v781, %v987
      %v1027 = vadd.f32 %v782, %v1005
      %v1028 = vadd.f32 %v783, %v1006
      %v1029 = vadd.f32 %v784, %v993
      %v1030 = vadd.f32 %v785, %v1007
      %v1031 = vadd.f32 %v786, %v1008
      %v1032 = vadd.f32 %v787, %v999
      %1033 = vset.pattern.permute.xlu0 2
      %1034 = vperm.xlu0 %1033, %v292
      %v1035 = vpop.permute.xlu0 %1034
      %1037 = vset.pattern.permute.xlu0 2
      %1038 = vperm.xlu0 %1037, %v293
      %v1039 = vpop.permute.xlu0 %1038
      %v1041 = vmul.f32 %v534, %v1035
      %v1042 = vmul.f32 %v535, %v1035
      %v1043 = vmul.f32 %v536, %v1035
      %v1044 = vmul.f32 %v537, %v1039
      %v1045 = vmul.f32 %v538, %v1039
      %v1046 = vmul.f32 %v539, %v1039
      %v1047 = vmul.f32 %v540, %v1035
      %v1048 = vmul.f32 %v541, %v1035
      %v1049 = vmul.f32 %v542, %v1035
      %v1050 = vmul.f32 %v543, %v1039
      %v1051 = vmul.f32 %v544, %v1039
      %v1052 = vmul.f32 %v545, %v1039
      %1053 = vset.pattern.permute.xlu0 5
      %1054 = vperm.xlu0 %1053, %v292
      %v1055 = vpop.permute.xlu0 %1054
      %1057 = vset.pattern.permute.xlu0 5
      %1058 = vperm.xlu0 %1057, %v293
      %v1059 = vpop.permute.xlu0 %1058
      %v1061 = vmul.f32 %v657, %v1055
      %v1062 = vmul.f32 %v658, %v1055
      %v1063 = vmul.f32 %v659, %v1055
      %v1064 = vmul.f32 %v660, %v1059
      %v1065 = vmul.f32 %v661, %v1059
      %v1066 = vmul.f32 %v662, %v1059
      %v1067 = vmul.f32 %v663, %v1055
      %v1068 = vmul.f32 %v664, %v1055
      %v1069 = vmul.f32 %v665, %v1055
      %v1070 = vmul.f32 %v666, %v1059
      %v1071 = vmul.f32 %v667, %v1059
      %v1072 = vmul.f32 %v668, %v1059
      %1085 = vrot.lane.b32.xlu0 %v1061, 112
      %v1086 = vpop.permute.xlu0 %1085
      %1087 = vrot.lane.b32.xlu0 %v1062, 112
      %v1088 = vpop.permute.xlu0 %1087
      %1089 = vrot.lane.b32.xlu0 %v1063, 112
      %v1090 = vpop.permute.xlu0 %1089
      %1091 = vrot.lane.b32.xlu0 %v1064, 112
      %v1092 = vpop.permute.xlu0 %1091
      %1093 = vrot.lane.b32.xlu0 %v1065, 112
      %v1094 = vpop.permute.xlu0 %1093
      %1095 = vrot.lane.b32.xlu0 %v1066, 112
      %v1096 = vpop.permute.xlu0 %1095
      %1097 = vrot.lane.b32.xlu0 %v1067, 112
      %v1098 = vpop.permute.xlu0 %1097
      %1099 = vrot.lane.b32.xlu0 %v1068, 112
      %v1100 = vpop.permute.xlu0 %1099
      %1101 = vrot.lane.b32.xlu0 %v1069, 112
      %v1102 = vpop.permute.xlu0 %1101
      %1103 = vrot.lane.b32.xlu0 %v1070, 112
      %v1104 = vpop.permute.xlu0 %1103
      %1105 = vrot.lane.b32.xlu0 %v1071, 112
      %v1106 = vpop.permute.xlu0 %1105
      %1107 = vrot.lane.b32.xlu0 %v1072, 112
      %v1108 = vpop.permute.xlu0 %1107
      %v1109 = vsel %vm624, %v1086, %v1088
      %v1110 = vsel %vm624, %v1088, %v1090
      %v1111 = vsel %vm624, %v1092, %v1094
      %v1112 = vsel %vm624, %v1094, %v1096
      %v1113 = vsel %vm624, %v1098, %v1100
      %v1114 = vsel %vm624, %v1100, %v1102
      %v1115 = vsel %vm624, %v1104, %v1106
      %v1116 = vsel %vm624, %v1106, %v1108
      %v1129 = vadd.f32 %v1041, %v1086
      %v1130 = vadd.f32 %v1042, %v1109
      %v1131 = vadd.f32 %v1043, %v1110
      %v1132 = vadd.f32 %v1044, %v1092
      %v1133 = vadd.f32 %v1045, %v1111
      %v1134 = vadd.f32 %v1046, %v1112
      %v1135 = vadd.f32 %v1047, %v1098
      %v1136 = vadd.f32 %v1048, %v1113
      %v1137 = vadd.f32 %v1049, %v1114
      %v1138 = vadd.f32 %v1050, %v1104
      %v1139 = vadd.f32 %v1051, %v1115
      %v1140 = vadd.f32 %v1052, %v1116
      %1141 = vset.pattern.permute.xlu0 8
      %1142 = vperm.xlu0 %1141, %v292
      %v1143 = vpop.permute.xlu0 %1142
      %1145 = vset.pattern.permute.xlu0 8
      %1146 = vperm.xlu0 %1145, %v293
      %v1147 = vpop.permute.xlu0 %1146
      %v1149 = vmul.f32 %v657, %v1143
      %v1150 = vmul.f32 %v658, %v1143
      %v1151 = vmul.f32 %v659, %v1143
      %v1152 = vmul.f32 %v660, %v1147
      %v1153 = vmul.f32 %v661, %v1147
      %v1154 = vmul.f32 %v662, %v1147
      %v1155 = vmul.f32 %v663, %v1143
      %v1156 = vmul.f32 %v664, %v1143
      %v1157 = vmul.f32 %v665, %v1143
      %v1158 = vmul.f32 %v666, %v1147
      %v1159 = vmul.f32 %v667, %v1147
      %v1160 = vmul.f32 %v668, %v1147
      %1173 = vrot.lane.b32.xlu0 %v1149, 96
      %v1174 = vpop.permute.xlu0 %1173
      %1175 = vrot.lane.b32.xlu0 %v1150, 96
      %v1176 = vpop.permute.xlu0 %1175
      %1177 = vrot.lane.b32.xlu0 %v1151, 96
      %v1178 = vpop.permute.xlu0 %1177
      %1179 = vrot.lane.b32.xlu0 %v1152, 96
      %v1180 = vpop.permute.xlu0 %1179
      %1181 = vrot.lane.b32.xlu0 %v1153, 96
      %v1182 = vpop.permute.xlu0 %1181
      %1183 = vrot.lane.b32.xlu0 %v1154, 96
      %v1184 = vpop.permute.xlu0 %1183
      %1185 = vrot.lane.b32.xlu0 %v1155, 96
      %v1186 = vpop.permute.xlu0 %1185
      %1187 = vrot.lane.b32.xlu0 %v1156, 96
      %v1188 = vpop.permute.xlu0 %1187
      %1189 = vrot.lane.b32.xlu0 %v1157, 96
      %v1190 = vpop.permute.xlu0 %1189
      %1191 = vrot.lane.b32.xlu0 %v1158, 96
      %v1192 = vpop.permute.xlu0 %1191
      %1193 = vrot.lane.b32.xlu0 %v1159, 96
      %v1194 = vpop.permute.xlu0 %1193
      %1195 = vrot.lane.b32.xlu0 %v1160, 96
      %v1196 = vpop.permute.xlu0 %1195
      %v1197 = vsel %vm725, %v1174, %v1176
      %v1198 = vsel %vm725, %v1176, %v1178
      %v1199 = vsel %vm725, %v1180, %v1182
      %v1200 = vsel %vm725, %v1182, %v1184
      %v1201 = vsel %vm725, %v1186, %v1188
      %v1202 = vsel %vm725, %v1188, %v1190
      %v1203 = vsel %vm725, %v1192, %v1194
      %v1204 = vsel %vm725, %v1194, %v1196
      %v1217 = vadd.f32 %v1129, %v1174
      %v1218 = vadd.f32 %v1130, %v1197
      %v1219 = vadd.f32 %v1131, %v1198
      %v1220 = vadd.f32 %v1132, %v1180
      %v1221 = vadd.f32 %v1133, %v1199
      %v1222 = vadd.f32 %v1134, %v1200
      %v1223 = vadd.f32 %v1135, %v1186
      %v1224 = vadd.f32 %v1136, %v1201
      %v1225 = vadd.f32 %v1137, %v1202
      %v1226 = vadd.f32 %v1138, %v1192
      %v1227 = vadd.f32 %v1139, %v1203
      %v1228 = vadd.f32 %v1140, %v1204
      %v1230 = vlaneseq
      %v1231 = vshrl.u32 %v1230, 7
      %v1232 = vsub.s32 0, %v1231
      %v1233 = vrot.slane %v533, %v1232
      %v1234 = vlaneseq
      %v1235 = vshrl.u32 %v1234, 7
      %v1236 = vsub.s32 1, %v1235
      %v1237 = vrot.slane %v533, %v1236
      %1238 = vrot.lane.b32.xlu0 %v1233, 113
      %v1239 = vpop.permute.xlu0 %1238
      %1240 = vrot.lane.b32.xlu0 %v1237, 113
      %v1241 = vpop.permute.xlu0 %1240
      %vm1242 = vcmask 924672
      %v1243 = vsel %vm1242, %v1239, %v1241
      %v1247 = vmul.f32 %v1217, %v1239
      %v1248 = vmul.f32 %v1218, %v1243
      %v1249 = vmul.f32 %v1219, %v1241
      %v1250 = vmul.f32 %v1220, %v1239
      %v1251 = vmul.f32 %v1221, %v1243
      %v1252 = vmul.f32 %v1222, %v1241
      %v1253 = vmul.f32 %v1223, %v1239
      %v1254 = vmul.f32 %v1224, %v1243
      %v1255 = vmul.f32 %v1225, %v1241
      %v1256 = vmul.f32 %v1226, %v1239
      %v1257 = vmul.f32 %v1227, %v1243
      %v1258 = vmul.f32 %v1228, %v1241
      %1271 = vrot.lane.b32.xlu0 %v1247, 126
      %v1272 = vpop.permute.xlu0 %1271
      %1273 = vrot.lane.b32.xlu0 %v1248, 126
      %v1274 = vpop.permute.xlu0 %1273
      %1275 = vrot.lane.b32.xlu0 %v1249, 126
      %v1276 = vpop.permute.xlu0 %1275
      %1277 = vrot.lane.b32.xlu0 %v1250, 126
      %v1278 = vpop.permute.xlu0 %1277
      %1279 = vrot.lane.b32.xlu0 %v1251, 126
      %v1280 = vpop.permute.xlu0 %1279
      %1281 = vrot.lane.b32.xlu0 %v1252, 126
      %v1282 = vpop.permute.xlu0 %1281
      %1283 = vrot.lane.b32.xlu0 %v1253, 126
      %v1284 = vpop.permute.xlu0 %1283
      %1285 = vrot.lane.b32.xlu0 %v1254, 126
      %v1286 = vpop.permute.xlu0 %1285
      %1287 = vrot.lane.b32.xlu0 %v1255, 126
      %v1288 = vpop.permute.xlu0 %1287
      %1289 = vrot.lane.b32.xlu0 %v1256, 126
      %v1290 = vpop.permute.xlu0 %1289
      %1291 = vrot.lane.b32.xlu0 %v1257, 126
      %v1292 = vpop.permute.xlu0 %1291
      %1293 = vrot.lane.b32.xlu0 %v1258, 126
      %v1294 = vpop.permute.xlu0 %1293
      %vm1295 = vcmask 1031168
      %v1296 = vsel %vm1295, %v1272, %v1274
      %v1297 = vsel %vm1295, %v1274, %v1276
      %v1298 = vsel %vm1295, %v1278, %v1280
      %v1299 = vsel %vm1295, %v1280, %v1282
      %v1300 = vsel %vm1295, %v1284, %v1286
      %v1301 = vsel %vm1295, %v1286, %v1288
      %v1302 = vsel %vm1295, %v1290, %v1292
      %v1303 = vsel %vm1295, %v1292, %v1294
      %v1316 = vadd.f32 %v1021, %v1296
      %v1317 = vadd.f32 %v1022, %v1297
      %v1318 = vadd.f32 %v1023, %v1276
      %v1319 = vadd.f32 %v1024, %v1298
      %v1320 = vadd.f32 %v1025, %v1299
      %v1321 = vadd.f32 %v1026, %v1282
      %v1322 = vadd.f32 %v1027, %v1300
      %v1323 = vadd.f32 %v1028, %v1301
      %v1324 = vadd.f32 %v1029, %v1288
      %v1325 = vadd.f32 %v1030, %v1302
      %v1326 = vadd.f32 %v1031, %v1303
      %v1327 = vadd.f32 %v1032, %v1294
      %1328 = vset.pattern.permute.xlu0 2
      %1329 = vperm.xlu0 %1328, %v287
      %v1330 = vpop.permute.xlu0 %1329
      %1332 = vset.pattern.permute.xlu0 2
      %1333 = vperm.xlu0 %1332, %v288
      %v1334 = vpop.permute.xlu0 %1333
      %v1336 = vadd.f32 %v1316, %v1330
      %v1337 = vadd.f32 %v1317, %v1330
      %v1338 = vadd.f32 %v1318, %v1330
      %v1339 = vadd.f32 %v1319, %v1334
      %v1340 = vadd.f32 %v1320, %v1334
      %v1341 = vadd.f32 %v1321, %v1334
      %v1342 = vadd.f32 %v1322, %v1330
      %v1343 = vadd.f32 %v1323, %v1330
      %v1344 = vadd.f32 %v1324, %v1330
      %v1345 = vadd.f32 %v1325, %v1334
      %v1346 = vadd.f32 %v1326, %v1334
      %v1347 = vadd.f32 %v1327, %v1334
      %vm1348 = vcmp.ge.f32.partialorder %v1336, 0.0
      %vm1349 = vcmp.ge.f32.partialorder %v1337, 0.0
      %vm1350 = vcmp.ge.f32.partialorder %v1338, 0.0
      %vm1351 = vcmp.ge.f32.partialorder %v1339, 0.0
      %vm1352 = vcmp.ge.f32.partialorder %v1340, 0.0
      %vm1353 = vcmp.ge.f32.partialorder %v1341, 0.0
      %vm1354 = vcmp.ge.f32.partialorder %v1342, 0.0
      %vm1355 = vcmp.ge.f32.partialorder %v1343, 0.0
      %vm1356 = vcmp.ge.f32.partialorder %v1344, 0.0
      %vm1357 = vcmp.ge.f32.partialorder %v1345, 0.0
      %vm1358 = vcmp.ge.f32.partialorder %v1346, 0.0
      %vm1359 = vcmp.ge.f32.partialorder %v1347, 0.0
      %1360 = vset.pattern.permute.xlu0 3
      %1361 = vperm.xlu0 %1360, %v287
      %v1362 = vpop.permute.xlu0 %1361
      %1364 = vset.pattern.permute.xlu0 3
      %1365 = vperm.xlu0 %1364, %v288
      %v1366 = vpop.permute.xlu0 %1365
      %v1368 = vmul.f32 %v1362, %v1336
      %v1369 = vmul.f32 %v1362, %v1337
      %v1370 = vmul.f32 %v1362, %v1338
      %v1371 = vmul.f32 %v1366, %v1339
      %v1372 = vmul.f32 %v1366, %v1340
      %v1373 = vmul.f32 %v1366, %v1341
      %v1374 = vmul.f32 %v1362, %v1342
      %v1375 = vmul.f32 %v1362, %v1343
      %v1376 = vmul.f32 %v1362, %v1344
      %v1377 = vmul.f32 %v1366, %v1345
      %v1378 = vmul.f32 %v1366, %v1346
      %v1379 = vmul.f32 %v1366, %v1347
      %v1380 = vsel %vm1348, %v1336, %v1368
      %v1381 = vsel %vm1349, %v1337, %v1369
      %v1382 = vsel %vm1350, %v1338, %v1370
      %v1383 = vsel %vm1351, %v1339, %v1371
      %v1384 = vsel %vm1352, %v1340, %v1372
      %v1385 = vsel %vm1353, %v1341, %v1373
      %v1386 = vsel %vm1354, %v1342, %v1374
      %v1387 = vsel %vm1355, %v1343, %v1375
      %v1388 = vsel %vm1356, %v1344, %v1376
      %v1389 = vsel %vm1357, %v1345, %v1377
      %v1390 = vsel %vm1358, %v1346, %v1378
      %v1391 = vsel %vm1359, %v1347, %v1379
      %1393 = vset.pattern.permute.xlu0 0
      %1394 = vperm.xlu0 %1393, %v289
      %v1395 = vpop.permute.xlu0 %1394
      %1403 = vrot.lane.b32.xlu0 %v1380, 17
      %v1404 = vpop.permute.xlu0 %1403
      %1405 = vrot.lane.b32.xlu0 %v1381, 17
      %v1406 = vpop.permute.xlu0 %1405
      %1407 = vrot.lane.b32.xlu0 %v1382, 17
      %v1408 = vpop.permute.xlu0 %1407
      %1409 = vrot.lane.b32.xlu0 %v1383, 17
      %v1410 = vpop.permute.xlu0 %1409
      %1411 = vrot.lane.b32.xlu0 %v1384, 17
      %v1412 = vpop.permute.xlu0 %1411
      %1413 = vrot.lane.b32.xlu0 %v1385, 17
      %v1414 = vpop.permute.xlu0 %1413
      %vm1415 = vcmask 138240
      %v1416 = vsel %vm1415, %v1404, %v1406
      %v1417 = vsel %vm1415, %v1406, %v1408
      %v1418 = vsel %vm1415, %v1410, %v1412
      %v1419 = vsel %vm1415, %v1412, %v1414
      %vm1424 = vcmask 130048
      %v1426 = vsel %vm1424, %v294, 0
      %1428 = vmatprep.subr.mxu0 0.0
      %1429 = vmatpush1.msra.mxu0 0.0
      %1430 = vmatprep.subr.mxu0 0.0
      %1431 = vmatpush1.msra.mxu0 0.0
      %1432 = vmatprep.subr.mxu0 0.0
      %1433 = vmatpush1.msra.mxu0 0.0
      %1434 = vmatprep.subr.mxu0 0.0
      %1435 = vmatpush1.msra.mxu0 0.0
      %1436 = vmatprep.subr.mxu0 0.0
      %1437 = vmatpush1.msra.mxu0 0.0
      %1438 = vmatprep.subr.mxu0 0.0
      %1439 = vmatpush1.msra.mxu0 0.0
      %1440 = vmatprep.subr.mxu0 0.0
      %1441 = vmatpush1.msra.mxu0 0.0
      %1442 = vmatprep.subr.mxu0 0.0
      %1443 = vmatpush1.msra.mxu0 0.0
      %1444 = vmatprep.subr.mxu0 0.0
      %1445 = vmatpush1.msra.mxu0 0.0
      %1446 = vmatprep.subr.mxu0 0.0
      %1447 = vmatpush1.msra.mxu0 0.0
      %1448 = vmatprep.subr.mxu0 0.0
      %1449 = vmatpush1.msra.mxu0 0.0
      %1450 = vmatprep.subr.mxu0 0.0
      %1451 = vmatpush1.msra.mxu0 0.0
      %1452 = vmatprep.subr.mxu0 0.0
      %1453 = vmatpush1.msra.mxu0 0.0
      %1454 = vmatprep.subr.mxu0 0.0
      %1455 = vmatpush1.msra.mxu0 0.0
      %1456 = vmatprep.subr.mxu0 %v1419
      %1457 = vmatpush1.msra.mxu0 %v1418
      %1458 = vmatprep.subr.mxu0 %v1417
      %1459 = vmatpush1.msra.mxu0 %v1416
      %1460 = vmatprep.subr.mxu0 0.0
      %1461 = vmatpush2.msra.mxu0 0.0
      %1462 = vmatprep.subr.mxu0 0.0
      %1463 = vmatpush2.msra.mxu0 0.0
      %1464 = vmatprep.subr.mxu0 0.0
      %1465 = vmatpush2.msra.mxu0 0.0
      %1466 = vmatprep.subr.mxu0 0.0
      %1467 = vmatpush2.msra.mxu0 0.0
      %1468 = vmatprep.subr.mxu0 0.0
      %1469 = vmatpush2.msra.mxu0 0.0
      %1470 = vmatprep.subr.mxu0 0.0
      %1471 = vmatpush2.msra.mxu0 0.0
      %1472 = vmatprep.subr.mxu0 0.0
      %1473 = vmatpush2.msra.mxu0 0.0
      %1474 = vmatprep.subr.mxu0 0.0
      %1475 = vmatpush2.msra.mxu0 0.0
      %1476 = vmatprep.subr.mxu0 0.0
      %1477 = vmatpush2.msra.mxu0 0.0
      %1478 = vmatprep.subr.mxu0 0.0
      %1479 = vmatpush2.msra.mxu0 0.0
      %1480 = vmatprep.subr.mxu0 0.0
      %1481 = vmatpush2.msra.mxu0 0.0
      %1482 = vmatprep.subr.mxu0 0.0
      %1483 = vmatpush2.msra.mxu0 0.0
      %1484 = vmatprep.subr.mxu0 0.0
      %1485 = vmatpush2.msra.mxu0 0.0
      %1486 = vmatprep.subr.mxu0 0.0
      %1487 = vmatpush2.msra.mxu0 0.0
      %1488 = vmatprep.subr.mxu0 0.0
      %1489 = vmatpush2.msra.mxu0 0.0
      %1490 = vmatprep.subr.mxu0 0.0
      %1491 = vmatpush2.msra.mxu0 0.0
      %1492 = vmatprep.mubr.f32.mxu0 0.0
      %1493 = vmatmul.mubr.f32.gmra.mxu0 %v1426
      %v1494 = vpop.f32.mrf.mxu0
      %v1495 = vadd.f32 %v1395, %v1494
      %v1496 = vpop.f32.mrf.mxu0
      %v1497 = vadd.f32 %v1395, %v1496
      %1498 = vdwg.mxu0
      %v1499 = vld [vmem:[%s278] sm:$0xff]
      %v1501 = vcombine.high %v1499, %v1499
      %v1503 = vadd.f32 %v1495, %v1499
      %v1504 = vadd.f32 %v1497, %v1501
      %v1507 = vcombine.low %v1503, %v1504
      %1509 = vst [vmem:[%s285] sm:$0xff] %v1507
      %1516 = vrot.lane.b32.xlu0 %v1386, 17
      %v1517 = vpop.permute.xlu0 %1516
      %1518 = vrot.lane.b32.xlu0 %v1387, 17
      %v1519 = vpop.permute.xlu0 %1518
      %1520 = vrot.lane.b32.xlu0 %v1388, 17
      %v1521 = vpop.permute.xlu0 %1520
      %1522 = vrot.lane.b32.xlu0 %v1389, 17
      %v1523 = vpop.permute.xlu0 %1522
      %1524 = vrot.lane.b32.xlu0 %v1390, 17
      %v1525 = vpop.permute.xlu0 %1524
      %1526 = vrot.lane.b32.xlu0 %v1391, 17
      %v1527 = vpop.permute.xlu0 %1526
      %v1528 = vsel %vm1415, %v1517, %v1519
      %v1529 = vsel %vm1415, %v1519, %v1521
      %v1530 = vsel %vm1415, %v1523, %v1525
      %v1531 = vsel %vm1415, %v1525, %v1527
      %1536 = vmatprep.subr.mxu0 0.0
      %1537 = vmatpush1.msra.mxu0 0.0
      %1538 = vmatprep.subr.mxu0 0.0
      %1539 = vmatpush1.msra.mxu0 0.0
      %1540 = vmatprep.subr.mxu0 0.0
      %1541 = vmatpush1.msra.mxu0 0.0
      %1542 = vmatprep.subr.mxu0 0.0
      %1543 = vmatpush1.msra.mxu0 0.0
      %1544 = vmatprep.subr.mxu0 0.0
      %1545 = vmatpush1.msra.mxu0 0.0
      %1546 = vmatprep.subr.mxu0 0.0
      %1547 = vmatpush1.msra.mxu0 0.0
      %1548 = vmatprep.subr.mxu0 0.0
      %1549 = vmatpush1.msra.mxu0 0.0
      %1550 = vmatprep.subr.mxu0 0.0
      %1551 = vmatpush1.msra.mxu0 0.0
      %1552 = vmatprep.subr.mxu0 0.0
      %1553 = vmatpush1.msra.mxu0 0.0
      %1554 = vmatprep.subr.mxu0 0.0
      %1555 = vmatpush1.msra.mxu0 0.0
      %1556 = vmatprep.subr.mxu0 0.0
      %1557 = vmatpush1.msra.mxu0 0.0
      %1558 = vmatprep.subr.mxu0 0.0
      %1559 = vmatpush1.msra.mxu0 0.0
      %1560 = vmatprep.subr.mxu0 0.0
      %1561 = vmatpush1.msra.mxu0 0.0
      %1562 = vmatprep.subr.mxu0 0.0
      %1563 = vmatpush1.msra.mxu0 0.0
      %1564 = vmatprep.subr.mxu0 %v1531
      %1565 = vmatpush1.msra.mxu0 %v1530
      %1566 = vmatprep.subr.mxu0 %v1529
      %1567 = vmatpush1.msra.mxu0 %v1528
      %1568 = vmatprep.subr.mxu0 0.0
      %1569 = vmatpush2.msra.mxu0 0.0
      %1570 = vmatprep.subr.mxu0 0.0
      %1571 = vmatpush2.msra.mxu0 0.0
      %1572 = vmatprep.subr.mxu0 0.0
      %1573 = vmatpush2.msra.mxu0 0.0
      %1574 = vmatprep.subr.mxu0 0.0
      %1575 = vmatpush2.msra.mxu0 0.0
      %1576 = vmatprep.subr.mxu0 0.0
      %1577 = vmatpush2.msra.mxu0 0.0
      %1578 = vmatprep.subr.mxu0 0.0
      %1579 = vmatpush2.msra.mxu0 0.0
      %1580 = vmatprep.subr.mxu0 0.0
      %1581 = vmatpush2.msra.mxu0 0.0
      %1582 = vmatprep.subr.mxu0 0.0
      %1583 = vmatpush2.msra.mxu0 0.0
      %1584 = vmatprep.subr.mxu0 0.0
      %1585 = vmatpush2.msra.mxu0 0.0
      %1586 = vmatprep.subr.mxu0 0.0
      %1587 = vmatpush2.msra.mxu0 0.0
      %1588 = vmatprep.subr.mxu0 0.0
      %1589 = vmatpush2.msra.mxu0 0.0
      %1590 = vmatprep.subr.mxu0 0.0
      %1591 = vmatpush2.msra.mxu0 0.0
      %1592 = vmatprep.subr.mxu0 0.0
      %1593 = vmatpush2.msra.mxu0 0.0
      %1594 = vmatprep.subr.mxu0 0.0
      %1595 = vmatpush2.msra.mxu0 0.0
      %1596 = vmatprep.subr.mxu0 0.0
      %1597 = vmatpush2.msra.mxu0 0.0
      %1598 = vmatprep.subr.mxu0 0.0
      %1599 = vmatpush2.msra.mxu0 0.0
      %1600 = vmatprep.mubr.f32.mxu0 0.0
      %1601 = vmatmul.mubr.f32.gmra.mxu0 %v1426
      %v1602 = vpop.f32.mrf.mxu0
      %v1603 = vadd.f32 %v1395, %v1602
      %v1604 = vpop.f32.mrf.mxu0
      %v1605 = vadd.f32 %v1395, %v1604
      %1606 = vdwg.mxu0
      %v1607 = vld [vmem:[%s429] sm:$0xff]
      %v1609 = vcombine.high %v1607, %v1607
      %v1611 = vadd.f32 %v1603, %v1607
      %v1612 = vadd.f32 %v1605, %v1609
      %v1615 = vcombine.low %v1611, %v1612
      %s1617 = scalar_lea.vmem %s285, 8
      %1618 = vst [vmem:[%s1617] sm:$0xff] %v1615
      %s1619 = smul.u32 2, %s18
      %p1620 = scmp.lt.s32.totalorder %s1619, 3
      %s1621 = scalar_select %p1620, %s1619, 3
      %s1622 = smul.addr %s1621, 2
      %s1623 = smul.addr %s1622, 4
      %s1624 = scalar_lea.vmem %s7, %s1623
      // Predicated region
      $region49: #{bottleneck_pallas.1} parent=47 // pred_check
        %p1625 = pneg %p188
      $region50: #{bottleneck_pallas.1} parent=47 // pred_check_branch
        %1627 = sbr.rel (%p1625) target = $region52
      $region51: #{bottleneck_pallas.1} parent=47 // pred_region
        %s1628 = smul.u32 2, %s18
      $region52: #{bottleneck_pallas.1} parent=47 // pred_fallthru
        _
    $region48: #{bottleneck_pallas.1} parent=5 // pred_fallthru
      _
    %p1629 = scmp.le.s32.totalorder 2, %s13
    // Predicated region
    $region53: #{bottleneck_pallas.1} parent=5 // pred_check
      %p1630 = pneg %p1629
    $region54: #{bottleneck_pallas.1} parent=5 // pred_check_branch
      %1632 = sbr.rel (%p1630) target = $region56
    $region55: #{bottleneck_pallas.1} parent=5 // pred_region
      %s1633 = ssub.s32 %s13, 2
      // Predicated region
      $region57: #{bottleneck_pallas.1} parent=55 // pred_check
        %p1634 = pneg %p194
      $region58: #{bottleneck_pallas.1} parent=55 // pred_check_branch
        %1636 = sbr.rel (%p1634) target = $region60
      $region59: #{bottleneck_pallas.1} parent=55 // pred_region
        %s1637 = smul.u32 2, %s19
        %p1638 = scmp.lt.s32.totalorder %s1637, 3
        %s1639 = scalar_select %p1638, %s1637, 3
        %s1640 = smul.addr %s1639, 2
        %s1641 = smul.addr %s1640, 4
        %s1642 = scalar_lea.vmem %s7, %s1641
      $region60: #{bottleneck_pallas.1} parent=55 // pred_fallthru
        _
    $region56: #{bottleneck_pallas.1} parent=5 // pred_fallthru
      _
  $region6: #{bottleneck_pallas.1} parent=0 // loop_footer
    %s17 = sadd.s32 1, %s13
  $region7: #{bottleneck_pallas.1} parent=0 // loop_footer_branch
    %12 = sbr.rel target = $region3
  $region8: #{bottleneck_pallas.1} parent=0 // loop_exit
    _

</llo_original>
